<compile_context>
chip_gen: v7x
topology: tpu7x:2x2x1
jax: 0.10.0
libtpu: 0.0.40
codegen_flags: <defaults>
</compile_context>

<pallas_src>
import jax
import jax.numpy as jnp
from jax.experimental import pallas as pl
from jax.experimental.pallas import tpu as pltpu


def _round_up(x, m):
    return (x + m - 1) // m * m


def _choose_tb(B):
    """Batch tile: sublane-aligned, <=1024 rows, and >=2 grid steps when the
    batch is big enough (keeps both v7x TensorCores busy)."""
    SUB = 8
    TB_MAX = 1024
    if B <= 2 * SUB:
        return B                      # single full-extent block (legal for any B)
    half = _round_up(pl.cdiv(B, 2), SUB)
    return min(TB_MAX, half)


def mlp_kernel(x_ref, w1_ref, b1_ref, w2_ref, b2_ref, o_ref):
    # x_ref:  (TB, D)  bf16    w1_ref: (D, H)  bf16    b1_ref: (1, H)  f32
    # w2_ref: (H, Op)  bf16    b2_ref: (1, Op) f32     o_ref:  (TB, Op) f32
    h = jnp.dot(x_ref[...], w1_ref[...], preferred_element_type=jnp.float32)
    h = jnp.maximum(h + b1_ref[...], 0.0)          # bias + ReLU in f32
    out = jnp.dot(h.astype(jnp.bfloat16), w2_ref[...],
                  preferred_element_type=jnp.float32)
    o_ref[...] = (out + b2_ref[...]).astype(o_ref.dtype)


def simple_mlp_forward(x_nchw, w1, b1, w2, b2):
    """x_nchw: (B, C, 28, 28) f32.  w1: (512, 784*C), b1: (512,),
    w2: (num_classes, 512), b2: (num_classes,).  Returns (B, num_classes) f32."""
    B = x_nchw.shape[0]
    H, D = w1.shape
    O = w2.shape[0]

    LANE = 128
    Op = _round_up(O, LANE)            # 10 -> 128: lane-dense output store

    # Flatten exactly like torch's x.view(-1, 28*28*C) on NCHW input; bf16 x
    # halves the dominant HBM stream (f32 MXU accumulation keeps accuracy).
    x_flat = x_nchw.reshape(B, D).astype(jnp.bfloat16)

    # One-time host-side weight prep: canonical (K, N) layouts, bf16.
    w1_t = w1.T.astype(jnp.bfloat16)                               # (D, H)
    w2_t = jnp.pad(w2, ((0, Op - O), (0, 0))).T.astype(jnp.bfloat16)  # (H, Op)
    b1_r = b1.reshape(1, H).astype(jnp.float32)
    b2_p = jnp.pad(b2, (0, Op - O)).reshape(1, Op).astype(jnp.float32)

    TB = _choose_tb(B)
    grid = (pl.cdiv(B, TB),)

    flops = 2 * B * (D * H + H * Op)
    bytes_accessed = (
        x_flat.size * 2 + w1_t.size * 2 + w2_t.size * 2
        + b1_r.size * 4 + b2_p.size * 4 + B * Op * 4
    )

    out = pl.pallas_call(
        mlp_kernel,
        out_shape=jax.ShapeDtypeStruct((B, Op), jnp.float32),
        grid_spec=pltpu.PrefetchScalarGridSpec(
            num_scalar_prefetch=0,
            grid=grid,
            in_specs=[
                pl.BlockSpec((TB, D), lambda i: (i, 0)),    # x tile, pipelined
                pl.BlockSpec((D, H), lambda i: (0, 0)),     # W1 resident
                pl.BlockSpec((1, H), lambda i: (0, 0)),     # b1 resident
                pl.BlockSpec((H, Op), lambda i: (0, 0)),    # W2 resident
                pl.BlockSpec((1, Op), lambda i: (0, 0)),    # b2 resident
            ],
            out_specs=pl.BlockSpec((TB, Op), lambda i: (i, 0)),
        ),
        compiler_params=pltpu.CompilerParams(
            dimension_semantics=("parallel",),              # v7x: split batch over TCs
        ),
        cost_estimate=pl.CostEstimate(
            flops=flops, transcendentals=0, bytes_accessed=bytes_accessed
        ),
    )(x_flat, w1_t, b1_r, w2_t, b2_p)

    # Slice away class padding (batch dim is already exact).
    return out[:, :O]


if __name__ == "__main__":
    # Small, deterministic config consistent with the module.
    input_channels = 1
    num_classes = 10
    batch = 2
    D = 28 * 28 * input_channels   # 784
    H = 512

    key = jax.random.PRNGKey(0)
    kx, kw1, kb1, kw2, kb2 = jax.random.split(key, 5)

    x = jax.random.normal(kx, (batch, input_channels, 28, 28), dtype=jnp.float32)

    # Deterministic parameter init (roughly matches nn.Linear uniform scale).
    bound1 = 1.0 / (D ** 0.5)
    bound2 = 1.0 / (H ** 0.5)
    w1 = jax.random.uniform(kw1, (H, D), jnp.float32, -bound1, bound1)
    b1 = jax.random.uniform(kb1, (H,), jnp.float32, -bound1, bound1)
    w2 = jax.random.uniform(kw2, (num_classes, H), jnp.float32, -bound2, bound2)
    b2 = jax.random.uniform(kb2, (num_classes,), jnp.float32, -bound2, bound2)

    out = simple_mlp_forward(x, w1, b1, w2, b2)
    out = jax.block_until_ready(out)

    # Reference check against plain f32 JAX (same math as the PyTorch forward).
    # Looser tolerance because matmul inputs are bf16 (f32 accumulation).
    x_flat = x.reshape(batch, D)
    ref = jnp.maximum(x_flat @ w1.T + b1, 0.0) @ w2.T + b2
    assert out.shape == (batch, num_classes)
    assert jnp.allclose(out, ref, atol=3e-2, rtol=3e-2)

    print("KERNEL_OK")
</pallas_src>

<mosaic_0001>
module attributes {stable_mosaic.version = 11 : i64} {
  func.func @mlp_kernel(%arg0: i32, %arg1: memref<2x784xbf16, #tpu.memory_space<vmem>>, %arg2: memref<784x512xbf16, #tpu.memory_space<vmem>>, %arg3: memref<1x512xf32, #tpu.memory_space<vmem>>, %arg4: memref<512x128xbf16, #tpu.memory_space<vmem>>, %arg5: memref<1x128xf32, #tpu.memory_space<vmem>>, %arg6: memref<2x128xf32, #tpu.memory_space<vmem>>) attributes {dimension_semantics = [#tpu.dimension_semantics<parallel>], iteration_bounds = array<i64: 1>, scalar_prefetch = 0 : i64, scratch_operands = 0 : i64, tpu.core_type = #tpu.core_type<tc>, window_params = [{transform_indices = @transform_0, window_bounds = array<i64: 2, 784>}, {pipeline_mode = #tpu.pipeline_mode<synchronous>, transform_indices = @transform_1, window_bounds = array<i64: 784, 512>}, {pipeline_mode = #tpu.pipeline_mode<synchronous>, transform_indices = @transform_2, window_bounds = array<i64: 1, 512>}, {pipeline_mode = #tpu.pipeline_mode<synchronous>, transform_indices = @transform_3, window_bounds = array<i64: 512, 128>}, {pipeline_mode = #tpu.pipeline_mode<synchronous>, transform_indices = @transform_4, window_bounds = array<i64: 1, 128>}, {transform_indices = @transform_5, window_bounds = array<i64: 2, 128>}]} {
    %c0 = arith.constant 0 : index
    %c0_0 = arith.constant 0 : index
    %0 = vector.load %arg1[%c0, %c0_0] : memref<2x784xbf16, #tpu.memory_space<vmem>>, vector<2x784xbf16>
    %c0_1 = arith.constant 0 : index
    %c0_2 = arith.constant 0 : index
    %1 = vector.load %arg2[%c0_1, %c0_2] : memref<784x512xbf16, #tpu.memory_space<vmem>>, vector<784x512xbf16>
    %cst = arith.constant dense<0.000000e+00> : vector<2x512xf32>
    %2 = tpu.matmul %0, %1, %cst {dimension_numbers = #tpu.dot_dimension_numbers<[1], [0], [0], [1], [0, 0, 1, 1], [], []>} : vector<2x784xbf16>, vector<784x512xbf16>, vector<2x512xf32> -> vector<2x512xf32>
    %c0_3 = arith.constant 0 : index
    %c0_4 = arith.constant 0 : index
    %3 = vector.load %arg3[%c0_3, %c0_4] : memref<1x512xf32, #tpu.memory_space<vmem>>, vector<1x512xf32>
    %4 = vector.broadcast %3 : vector<1x512xf32> to vector<2x512xf32>
    %5 = arith.addf %2, %4 : vector<2x512xf32>
    %cst_5 = arith.constant 0.000000e+00 : f32
    %6 = vector.broadcast %cst_5 : f32 to vector<2x512xf32>
    %7 = arith.maximumf %5, %6 : vector<2x512xf32>
    %8 = arith.truncf %7 : vector<2x512xf32> to vector<2x512xbf16>
    %c0_6 = arith.constant 0 : index
    %c0_7 = arith.constant 0 : index
    %9 = vector.load %arg4[%c0_6, %c0_7] : memref<512x128xbf16, #tpu.memory_space<vmem>>, vector<512x128xbf16>
    %cst_8 = arith.constant dense<0.000000e+00> : vector<2x128xf32>
    %10 = tpu.matmul %8, %9, %cst_8 {dimension_numbers = #tpu.dot_dimension_numbers<[1], [0], [0], [1], [0, 0, 1, 1], [], []>} : vector<2x512xbf16>, vector<512x128xbf16>, vector<2x128xf32> -> vector<2x128xf32>
    %c0_9 = arith.constant 0 : index
    %c0_10 = arith.constant 0 : index
    %11 = vector.load %arg5[%c0_9, %c0_10] : memref<1x128xf32, #tpu.memory_space<vmem>>, vector<1x128xf32>
    %12 = vector.broadcast %11 : vector<1x128xf32> to vector<2x128xf32>
    %13 = arith.addf %10, %12 : vector<2x128xf32>
    %c0_11 = arith.constant 0 : index
    %c0_12 = arith.constant 0 : index
    %14 = vector.load %arg6[%c0_11, %c0_12] : memref<2x128xf32, #tpu.memory_space<vmem>>, vector<2x128xf32>
    tpu.vector_store %arg6[%c0_11, %c0_12], %13 {strides = array<i32>} : memref<2x128xf32, #tpu.memory_space<vmem>>, vector<2x128xf32>,
    return
  }
  func.func @transform_0(%arg0: i32) -> (i32, i32) {
    %c0_i32 = arith.constant 0 : i32
    %c0_i32_0 = arith.constant 0 : i32
    return %arg0, %c0_i32 : i32, i32
  }
  func.func @transform_1(%arg0: i32) -> (i32, i32) {
    %c0_i32 = arith.constant 0 : i32
    %c0_i32_0 = arith.constant 0 : i32
    %c0_i32_1 = arith.constant 0 : i32
    return %c0_i32, %c0_i32_0 : i32, i32
  }
  func.func @transform_2(%arg0: i32) -> (i32, i32) {
    %c0_i32 = arith.constant 0 : i32
    %c0_i32_0 = arith.constant 0 : i32
    %c0_i32_1 = arith.constant 0 : i32
    return %c0_i32, %c0_i32_0 : i32, i32
  }
  func.func @transform_3(%arg0: i32) -> (i32, i32) {
    %c0_i32 = arith.constant 0 : i32
    %c0_i32_0 = arith.constant 0 : i32
    %c0_i32_1 = arith.constant 0 : i32
    return %c0_i32, %c0_i32_0 : i32, i32
  }
  func.func @transform_4(%arg0: i32) -> (i32, i32) {
    %c0_i32 = arith.constant 0 : i32
    %c0_i32_0 = arith.constant 0 : i32
    %c0_i32_1 = arith.constant 0 : i32
    return %c0_i32, %c0_i32_0 : i32, i32
  }
  func.func @transform_5(%arg0: i32) -> (i32, i32) {
    %c0_i32 = arith.constant 0 : i32
    %c0_i32_0 = arith.constant 0 : i32
    return %arg0, %c0_i32 : i32, i32
  }
}

</mosaic_0001>

<llo_original>
// kernel: tpu_custom_call.1
$region0: #{tpu_custom_call.1}
  #allocation0 [shape = 'u32[]', space=smem, size = 0x4, offset = 0x4, fixed_abs, tag = 'smem constant byte address 0x4 - core index']
  #allocation1 [shape = 'u32[144,128]{1,0:T(1,128)}', space=vmem, size = 0x12000, scoped, tag = 'internal scratch']
  %s0 = inlined_call_operand.hbm [shape: bf16[2,784], index: 0, kind: input, shape index: {}]
  %s1 = inlined_call_operand.hbm [shape: bf16[784,512], index: 1, kind: input, shape index: {}]
  %s2 = inlined_call_operand.vmem [shape: f32[1,512], index: 2, kind: input, shape index: {}]
  %s3 = inlined_call_operand.hbm [shape: bf16[512,128], index: 3, kind: input, shape index: {}]
  %s4 = inlined_call_operand.vmem [shape: f32[1,128], index: 4, kind: input, shape index: {}]
  %s5 = inlined_call_operand.hbm [shape: f32[2,128], index: 5, kind: output, shape index: {}]
  %s6 = sld [smem:[#allocation0]]
  $region42: #{tpu_custom_call.1} parent=0
    _
  %s8 = ssub.s32 1, %s6
  %s9 = scalar_select 0, %s8, %s6
  $region1: #{tpu_custom_call.1} parent=0
    #allocation2 [shape = 'u8[3584]{0}', space=vmem, size = 0x1000, scoped, tag = 'input window, operand 0, single buffered']
    #allocation3 [shape = 's32[1]{0}', space=sflag, size = 0x4, scoped, tag = 'scoped memory for tpu_custom_call.1']
    #allocation4 [shape = 's32[1]{0}', space=sflag, size = 0x4, scoped, tag = 'scoped memory for tpu_custom_call.1']
    #allocation5 [shape = 'u8[802816]{0}', space=vmem, size = 0xc4000, scoped, tag = 'input window, operand 1, single buffered']
    #allocation6 [shape = 's32[1]{0}', space=sflag, size = 0x4, scoped, tag = 'scoped memory for tpu_custom_call.1']
    #allocation7 [shape = 'u8[131072]{0}', space=vmem, size = 0x20000, scoped, tag = 'input window, operand 3, single buffered']
    #allocation8 [shape = 'u8[1024]{0}', space=vmem, size = 0x400, scoped, tag = 'output window, operand 0, single buffered']
    %10 = vsyncpa [#allocation3], 0
    %11 = vsyncpa [#allocation6], 0
    %12 = vsyncpa [#allocation4], 0
    // Predicated region
    $region2: #{tpu_custom_call.1} parent=1 // pred_check
      _
    $region3: #{tpu_custom_call.1} parent=1 // pred_check_branch
      %14 = sbr.rel (0) target = $region5
    $region4: #{tpu_custom_call.1} parent=1 // pred_region
      %s16 = ssub.s32 112, 112
      %17 = vsyncadd [#allocation3], %s16
      %s19 = sshll.u32 [#allocation2], 4
      %s20 = int_to_ptr.vmem [resolvable:$true] %s19
      %22 = dma.hbm_to_vmem [thread:$0]  %s0, 112, %s20, [#allocation3]
    $region5: #{tpu_custom_call.1} parent=1 // pred_fallthru
      _
    // Predicated region
    $region6: #{tpu_custom_call.1} parent=1 // pred_check
      _
    $region7: #{tpu_custom_call.1} parent=1 // pred_check_branch
      %24 = sbr.rel (0) target = $region9
    $region8: #{tpu_custom_call.1} parent=1 // pred_region
      %s26 = ssub.s32 25088, 25088
      %27 = vsyncadd [#allocation6], %s26
      %s28 = sshll.u32 [#allocation5], 4
      %s29 = int_to_ptr.vmem [resolvable:$true] %s28
      %34 = dma.hbm_to_vmem [thread:$0]  %s1, 25088, %s29, [#allocation6], 256, 256, 16
    $region9: #{tpu_custom_call.1} parent=1 // pred_fallthru
      _
    // Predicated region
    $region10: #{tpu_custom_call.1} parent=1 // pred_check
      _
    $region11: #{tpu_custom_call.1} parent=1 // pred_check_branch
      %36 = sbr.rel (0) target = $region13
    $region12: #{tpu_custom_call.1} parent=1 // pred_region
      _
    $region13: #{tpu_custom_call.1} parent=1 // pred_fallthru
      _
    // Predicated region
    $region14: #{tpu_custom_call.1} parent=1 // pred_check
      _
    $region15: #{tpu_custom_call.1} parent=1 // pred_check_branch
      %38 = sbr.rel (0) target = $region17
    $region16: #{tpu_custom_call.1} parent=1 // pred_region
      %s40 = ssub.s32 4096, 4096
      %41 = vsyncadd [#allocation6], %s40
      %s42 = sshll.u32 [#allocation7], 4
      %s43 = int_to_ptr.vmem [resolvable:$true] %s42
      %48 = dma.hbm_to_vmem [thread:$0]  %s3, 4096, %s43, [#allocation6], 64, 64, 4
    $region17: #{tpu_custom_call.1} parent=1 // pred_fallthru
      _
    // Predicated region
    $region18: #{tpu_custom_call.1} parent=1 // pred_check
      _
    $region19: #{tpu_custom_call.1} parent=1 // pred_check_branch
      %50 = sbr.rel (0) target = $region21
    $region20: #{tpu_custom_call.1} parent=1 // pred_region
      _
    $region21: #{tpu_custom_call.1} parent=1 // pred_fallthru
      _
    // Predicated region
    $region22: #{tpu_custom_call.1} parent=1 // pred_check
      _
    $region23: #{tpu_custom_call.1} parent=1 // pred_check_branch
      %52 = sbr.rel (0) target = $region25
    $region24: #{tpu_custom_call.1} parent=1 // pred_region
      %53 = dma.done [#allocation3], 112
    $region25: #{tpu_custom_call.1} parent=1 // pred_fallthru
      _
    // Predicated region
    $region26: #{tpu_custom_call.1} parent=1 // pred_check
      _
    $region27: #{tpu_custom_call.1} parent=1 // pred_check_branch
      %55 = sbr.rel (0) target = $region29
    $region28: #{tpu_custom_call.1} parent=1 // pred_region
      %56 = dma.done [#allocation6], 25088
    $region29: #{tpu_custom_call.1} parent=1 // pred_fallthru
      _
    // Predicated region
    $region30: #{tpu_custom_call.1} parent=1 // pred_check
      _
    $region31: #{tpu_custom_call.1} parent=1 // pred_check_branch
      %58 = sbr.rel (0) target = $region33
    $region32: #{tpu_custom_call.1} parent=1 // pred_region
      %59 = dma.done [#allocation6], 4096
    $region33: #{tpu_custom_call.1} parent=1 // pred_fallthru
      _
    %v61 = vld [vmem:[#allocation2] sm:$0x7f]
    %v62 = vld [vmem:[#allocation5] sm:$0xff]
    %v63 = vld [vmem:[#allocation5 + $0x8] sm:$0xff]
    %v64 = vld [vmem:[#allocation5 + $0x10] sm:$0xff]
    %v65 = vld [vmem:[#allocation5 + $0x18] sm:$0xff]
    %v66 = vld [vmem:[#allocation5 + $0x20] sm:$0xff]
    %v67 = vld [vmem:[#allocation5 + $0x28] sm:$0xff]
    %v68 = vld [vmem:[#allocation5 + $0x30] sm:$0xff]
    %v69 = vld [vmem:[#allocation5 + $0x38] sm:$0xff]
    %v70 = vld [vmem:[#allocation5 + $0x40] sm:$0xff]
    %v71 = vld [vmem:[#allocation5 + $0x48] sm:$0xff]
    %v72 = vld [vmem:[#allocation5 + $0x50] sm:$0xff]
    %v73 = vld [vmem:[#allocation5 + $0x58] sm:$0xff]
    %v74 = vld [vmem:[#allocation5 + $0x60] sm:$0xff]
    %v75 = vld [vmem:[#allocation5 + $0x68] sm:$0xff]
    %v76 = vld [vmem:[#allocation5 + $0x70] sm:$0xff]
    %v77 = vld [vmem:[#allocation5 + $0x78] sm:$0xff]
    %v78 = vld [vmem:[#allocation5 + $0x80] sm:$0xff]
    %v79 = vld [vmem:[#allocation5 + $0x88] sm:$0xff]
    %v80 = vld [vmem:[#allocation5 + $0x90] sm:$0xff]
    %v81 = vld [vmem:[#allocation5 + $0x98] sm:$0xff]
    %v82 = vld [vmem:[#allocation5 + $0xa0] sm:$0xff]
    %v83 = vld [vmem:[#allocation5 + $0xa8] sm:$0xff]
    %v84 = vld [vmem:[#allocation5 + $0xb0] sm:$0xff]
    %v85 = vld [vmem:[#allocation5 + $0xb8] sm:$0xff]
    %v86 = vld [vmem:[#allocation5 + $0xc0] sm:$0xff]
    %v87 = vld [vmem:[#allocation5 + $0xc8] sm:$0xff]
    %v88 = vld [vmem:[#allocation5 + $0xd0] sm:$0xff]
    %v89 = vld [vmem:[#allocation5 + $0xd8] sm:$0xff]
    %v90 = vld [vmem:[#allocation5 + $0xe0] sm:$0xff]
    %v91 = vld [vmem:[#allocation5 + $0xe8] sm:$0xff]
    %v92 = vld [vmem:[#allocation5 + $0xf0] sm:$0xff]
    %v93 = vld [vmem:[#allocation5 + $0xf8] sm:$0xff]
    %v94 = vld [vmem:[#allocation5 + $0x100] sm:$0xff]
    %v95 = vld [vmem:[#allocation5 + $0x108] sm:$0xff]
    %v96 = vld [vmem:[#allocation5 + $0x110] sm:$0xff]
    %v97 = vld [vmem:[#allocation5 + $0x118] sm:$0xff]
    %v98 = vld [vmem:[#allocation5 + $0x120] sm:$0xff]
    %v99 = vld [vmem:[#allocation5 + $0x128] sm:$0xff]
    %v100 = vld [vmem:[#allocation5 + $0x130] sm:$0xff]
    %v101 = vld [vmem:[#allocation5 + $0x138] sm:$0xff]
    %v102 = vld [vmem:[#allocation5 + $0x140] sm:$0xff]
    %v103 = vld [vmem:[#allocation5 + $0x148] sm:$0xff]
    %v104 = vld [vmem:[#allocation5 + $0x150] sm:$0xff]
    %v105 = vld [vmem:[#allocation5 + $0x158] sm:$0xff]
    %v106 = vld [vmem:[#allocation5 + $0x160] sm:$0xff]
    %v107 = vld [vmem:[#allocation5 + $0x168] sm:$0xff]
    %v108 = vld [vmem:[#allocation5 + $0x170] sm:$0xff]
    %v109 = vld [vmem:[#allocation5 + $0x178] sm:$0xff]
    %v110 = vld [vmem:[#allocation5 + $0x180] sm:$0xff]
    %v111 = vld [vmem:[#allocation5 + $0x188] sm:$0xff]
    %v112 = vld [vmem:[#allocation5 + $0x190] sm:$0xff]
    %v113 = vld [vmem:[#allocation5 + $0x198] sm:$0xff]
    %v114 = vld [vmem:[#allocation5 + $0x1a0] sm:$0xff]
    %v115 = vld [vmem:[#allocation5 + $0x1a8] sm:$0xff]
    %v116 = vld [vmem:[#allocation5 + $0x1b0] sm:$0xff]
    %v117 = vld [vmem:[#allocation5 + $0x1b8] sm:$0xff]
    %v118 = vld [vmem:[#allocation5 + $0x1c0] sm:$0xff]
    %v119 = vld [vmem:[#allocation5 + $0x1c8] sm:$0xff]
    %v120 = vld [vmem:[#allocation5 + $0x1d0] sm:$0xff]
    %v121 = vld [vmem:[#allocation5 + $0x1d8] sm:$0xff]
    %v122 = vld [vmem:[#allocation5 + $0x1e0] sm:$0xff]
    %v123 = vld [vmem:[#allocation5 + $0x1e8] sm:$0xff]
    %v124 = vld [vmem:[#allocation5 + $0x1f0] sm:$0xff]
    %v125 = vld [vmem:[#allocation5 + $0x1f8] sm:$0xff]
    %v126 = vld [vmem:[#allocation5 + $0x200] sm:$0xff]
    %v127 = vld [vmem:[#allocation5 + $0x208] sm:$0xff]
    %v128 = vld [vmem:[#allocation5 + $0x210] sm:$0xff]
    %v129 = vld [vmem:[#allocation5 + $0x218] sm:$0xff]
    %v130 = vld [vmem:[#allocation5 + $0x220] sm:$0xff]
    %v131 = vld [vmem:[#allocation5 + $0x228] sm:$0xff]
    %v132 = vld [vmem:[#allocation5 + $0x230] sm:$0xff]
    %v133 = vld [vmem:[#allocation5 + $0x238] sm:$0xff]
    %v134 = vld [vmem:[#allocation5 + $0x240] sm:$0xff]
    %v135 = vld [vmem:[#allocation5 + $0x248] sm:$0xff]
    %v136 = vld [vmem:[#allocation5 + $0x250] sm:$0xff]
    %v137 = vld [vmem:[#allocation5 + $0x258] sm:$0xff]
    %v138 = vld [vmem:[#allocation5 + $0x260] sm:$0xff]
    %v139 = vld [vmem:[#allocation5 + $0x268] sm:$0xff]
    %v140 = vld [vmem:[#allocation5 + $0x270] sm:$0xff]
    %v141 = vld [vmem:[#allocation5 + $0x278] sm:$0xff]
    %v142 = vld [vmem:[#allocation5 + $0x280] sm:$0xff]
    %v143 = vld [vmem:[#allocation5 + $0x288] sm:$0xff]
    %v144 = vld [vmem:[#allocation5 + $0x290] sm:$0xff]
    %v145 = vld [vmem:[#allocation5 + $0x298] sm:$0xff]
    %v146 = vld [vmem:[#allocation5 + $0x2a0] sm:$0xff]
    %v147 = vld [vmem:[#allocation5 + $0x2a8] sm:$0xff]
    %v148 = vld [vmem:[#allocation5 + $0x2b0] sm:$0xff]
    %v149 = vld [vmem:[#allocation5 + $0x2b8] sm:$0xff]
    %v150 = vld [vmem:[#allocation5 + $0x2c0] sm:$0xff]
    %v151 = vld [vmem:[#allocation5 + $0x2c8] sm:$0xff]
    %v152 = vld [vmem:[#allocation5 + $0x2d0] sm:$0xff]
    %v153 = vld [vmem:[#allocation5 + $0x2d8] sm:$0xff]
    %v154 = vld [vmem:[#allocation5 + $0x2e0] sm:$0xff]
    %v155 = vld [vmem:[#allocation5 + $0x2e8] sm:$0xff]
    %v156 = vld [vmem:[#allocation5 + $0x2f0] sm:$0xff]
    %v157 = vld [vmem:[#allocation5 + $0x2f8] sm:$0xff]
    %v158 = vld [vmem:[#allocation5 + $0x300] sm:$0xff]
    %v159 = vld [vmem:[#allocation5 + $0x308] sm:$0xff]
    %v160 = vld [vmem:[#allocation5 + $0x310] sm:$0xff]
    %v161 = vld [vmem:[#allocation5 + $0x318] sm:$0xff]
    %v162 = vld [vmem:[#allocation5 + $0x320] sm:$0xff]
    %v163 = vld [vmem:[#allocation5 + $0x328] sm:$0xff]
    %v164 = vld [vmem:[#allocation5 + $0x330] sm:$0xff]
    %v165 = vld [vmem:[#allocation5 + $0x338] sm:$0xff]
    %v166 = vld [vmem:[#allocation5 + $0x340] sm:$0xff]
    %v167 = vld [vmem:[#allocation5 + $0x348] sm:$0xff]
    %v168 = vld [vmem:[#allocation5 + $0x350] sm:$0xff]
    %v169 = vld [vmem:[#allocation5 + $0x358] sm:$0xff]
    %v170 = vld [vmem:[#allocation5 + $0x360] sm:$0xff]
    %v171 = vld [vmem:[#allocation5 + $0x368] sm:$0xff]
    %v172 = vld [vmem:[#allocation5 + $0x370] sm:$0xff]
    %v173 = vld [vmem:[#allocation5 + $0x378] sm:$0xff]
    %v174 = vld [vmem:[#allocation5 + $0x380] sm:$0xff]
    %v175 = vld [vmem:[#allocation5 + $0x388] sm:$0xff]
    %v176 = vld [vmem:[#allocation5 + $0x390] sm:$0xff]
    %v177 = vld [vmem:[#allocation5 + $0x398] sm:$0xff]
    %v178 = vld [vmem:[#allocation5 + $0x3a0] sm:$0xff]
    %v179 = vld [vmem:[#allocation5 + $0x3a8] sm:$0xff]
    %v180 = vld [vmem:[#allocation5 + $0x3b0] sm:$0xff]
    %v181 = vld [vmem:[#allocation5 + $0x3b8] sm:$0xff]
    %v182 = vld [vmem:[#allocation5 + $0x3c0] sm:$0xff]
    %v183 = vld [vmem:[#allocation5 + $0x3c8] sm:$0xff]
    %v184 = vld [vmem:[#allocation5 + $0x3d0] sm:$0xff]
    %v185 = vld [vmem:[#allocation5 + $0x3d8] sm:$0xff]
    %v186 = vld [vmem:[#allocation5 + $0x3e0] sm:$0xff]
    %v187 = vld [vmem:[#allocation5 + $0x3e8] sm:$0xff]
    %v188 = vld [vmem:[#allocation5 + $0x3f0] sm:$0xff]
    %v189 = vld [vmem:[#allocation5 + $0x3f8] sm:$0xff]
    %v190 = vld [vmem:[#allocation5 + $0x400] sm:$0xff]
    %v191 = vld [vmem:[#allocation5 + $0x408] sm:$0xff]
    %v192 = vld [vmem:[#allocation5 + $0x410] sm:$0xff]
    %v193 = vld [vmem:[#allocation5 + $0x418] sm:$0xff]
    %v194 = vld [vmem:[#allocation5 + $0x420] sm:$0xff]
    %v195 = vld [vmem:[#allocation5 + $0x428] sm:$0xff]
    %v196 = vld [vmem:[#allocation5 + $0x430] sm:$0xff]
    %v197 = vld [vmem:[#allocation5 + $0x438] sm:$0xff]
    %v198 = vld [vmem:[#allocation5 + $0x440] sm:$0xff]
    %v199 = vld [vmem:[#allocation5 + $0x448] sm:$0xff]
    %v200 = vld [vmem:[#allocation5 + $0x450] sm:$0xff]
    %v201 = vld [vmem:[#allocation5 + $0x458] sm:$0xff]
    %v202 = vld [vmem:[#allocation5 + $0x460] sm:$0xff]
    %v203 = vld [vmem:[#allocation5 + $0x468] sm:$0xff]
    %v204 = vld [vmem:[#allocation5 + $0x470] sm:$0xff]
    %v205 = vld [vmem:[#allocation5 + $0x478] sm:$0xff]
    %v206 = vld [vmem:[#allocation5 + $0x480] sm:$0xff]
    %v207 = vld [vmem:[#allocation5 + $0x488] sm:$0xff]
    %v208 = vld [vmem:[#allocation5 + $0x490] sm:$0xff]
    %v209 = vld [vmem:[#allocation5 + $0x498] sm:$0xff]
    %v210 = vld [vmem:[#allocation5 + $0x4a0] sm:$0xff]
    %v211 = vld [vmem:[#allocation5 + $0x4a8] sm:$0xff]
    %v212 = vld [vmem:[#allocation5 + $0x4b0] sm:$0xff]
    %v213 = vld [vmem:[#allocation5 + $0x4b8] sm:$0xff]
    %v214 = vld [vmem:[#allocation5 + $0x4c0] sm:$0xff]
    %v215 = vld [vmem:[#allocation5 + $0x4c8] sm:$0xff]
    %v216 = vld [vmem:[#allocation5 + $0x4d0] sm:$0xff]
    %v217 = vld [vmem:[#allocation5 + $0x4d8] sm:$0xff]
    %v218 = vld [vmem:[#allocation5 + $0x4e0] sm:$0xff]
    %v219 = vld [vmem:[#allocation5 + $0x4e8] sm:$0xff]
    %v220 = vld [vmem:[#allocation5 + $0x4f0] sm:$0xff]
    %v221 = vld [vmem:[#allocation5 + $0x4f8] sm:$0xff]
    %v222 = vld [vmem:[#allocation5 + $0x500] sm:$0xff]
    %v223 = vld [vmem:[#allocation5 + $0x508] sm:$0xff]
    %v224 = vld [vmem:[#allocation5 + $0x510] sm:$0xff]
    %v225 = vld [vmem:[#allocation5 + $0x518] sm:$0xff]
    %v226 = vld [vmem:[#allocation5 + $0x520] sm:$0xff]
    %v227 = vld [vmem:[#allocation5 + $0x528] sm:$0xff]
    %v228 = vld [vmem:[#allocation5 + $0x530] sm:$0xff]
    %v229 = vld [vmem:[#allocation5 + $0x538] sm:$0xff]
    %v230 = vld [vmem:[#allocation5 + $0x540] sm:$0xff]
    %v231 = vld [vmem:[#allocation5 + $0x548] sm:$0xff]
    %v232 = vld [vmem:[#allocation5 + $0x550] sm:$0xff]
    %v233 = vld [vmem:[#allocation5 + $0x558] sm:$0xff]
    %v234 = vld [vmem:[#allocation5 + $0x560] sm:$0xff]
    %v235 = vld [vmem:[#allocation5 + $0x568] sm:$0xff]
    %v236 = vld [vmem:[#allocation5 + $0x570] sm:$0xff]
    %v237 = vld [vmem:[#allocation5 + $0x578] sm:$0xff]
    %v238 = vld [vmem:[#allocation5 + $0x580] sm:$0xff]
    %v239 = vld [vmem:[#allocation5 + $0x588] sm:$0xff]
    %v240 = vld [vmem:[#allocation5 + $0x590] sm:$0xff]
    %v241 = vld [vmem:[#allocation5 + $0x598] sm:$0xff]
    %v242 = vld [vmem:[#allocation5 + $0x5a0] sm:$0xff]
    %v243 = vld [vmem:[#allocation5 + $0x5a8] sm:$0xff]
    %v244 = vld [vmem:[#allocation5 + $0x5b0] sm:$0xff]
    %v245 = vld [vmem:[#allocation5 + $0x5b8] sm:$0xff]
    %v246 = vld [vmem:[#allocation5 + $0x5c0] sm:$0xff]
    %v247 = vld [vmem:[#allocation5 + $0x5c8] sm:$0xff]
    %v248 = vld [vmem:[#allocation5 + $0x5d0] sm:$0xff]
    %v249 = vld [vmem:[#allocation5 + $0x5d8] sm:$0xff]
    %v250 = vld [vmem:[#allocation5 + $0x5e0] sm:$0xff]
    %v251 = vld [vmem:[#allocation5 + $0x5e8] sm:$0xff]
    %v252 = vld [vmem:[#allocation5 + $0x5f0] sm:$0xff]
    %v253 = vld [vmem:[#allocation5 + $0x5f8] sm:$0xff]
    %v254 = vld [vmem:[#allocation5 + $0x600] sm:$0xff]
    %v255 = vld [vmem:[#allocation5 + $0x608] sm:$0xff]
    %v256 = vld [vmem:[#allocation5 + $0x610] sm:$0xff]
    %v257 = vld [vmem:[#allocation5 + $0x618] sm:$0xff]
    %v258 = vld [vmem:[%s2] sm:$0xf]
    %v260 = vlaneseq
    %v261 = vshrl.u32 %v260, 7
    %v262 = vsub.s32 0, %v261
    %v263 = vrot.slane %v258, %v262
    %v264 = vlaneseq
    %v265 = vshrl.u32 %v264, 7
    %v266 = vsub.s32 1, %v265
    %v267 = vrot.slane %v258, %v266
    %v268 = vlaneseq
    %v269 = vshrl.u32 %v268, 7
    %v270 = vsub.s32 2, %v269
    %v271 = vrot.slane %v258, %v270
    %v272 = vlaneseq
    %v273 = vshrl.u32 %v272, 7
    %v274 = vsub.s32 3, %v273
    %v275 = vrot.slane %v258, %v274
    %v281 = vcombine.high %v61, %v61
    %v283 = vunpack.c.l.s4 1966171168
    %v284 = vunpack.c.0.s8 %v283
    %v285 = vlaneseq
    %v286 = vshrl.u32 %v285, 7
    %v287 = vsub.s32 %v284, %v286
    %v288 = vrot.slane %v61, %v287
    %v290 = vunpack.c.l.s4 1966171168
    %v291 = vunpack.c.0.s8 %v290
    %v292 = vlaneseq
    %v293 = vshrl.u32 %v292, 7
    %v294 = vsub.s32 %v291, %v293
    %v295 = vrot.slane %v281, %v294
    %v296 = vcombine.high %v288, %v288
    %v297 = vcombine.high %v295, %v295
    %v299 = vunpack.c.l.s4 1966171168
    %v300 = vunpack.c.0.s8 %v299
    %v301 = vlaneseq
    %v302 = vshrl.u32 %v301, 7
    %v303 = vsub.s32 %v300, %v302
    %v304 = vrot.slane %v288, %v303
    %v306 = vunpack.c.l.s4 1966171168
    %v307 = vunpack.c.0.s8 %v306
    %v308 = vlaneseq
    %v309 = vshrl.u32 %v308, 7
    %v310 = vsub.s32 %v307, %v309
    %v311 = vrot.slane %v295, %v310
    %v313 = vunpack.c.l.s4 1966171168
    %v314 = vunpack.c.0.s8 %v313
    %v315 = vlaneseq
    %v316 = vshrl.u32 %v315, 7
    %v317 = vsub.s32 %v314, %v316
    %v318 = vrot.slane %v296, %v317
    %v320 = vunpack.c.l.s4 1966171168
    %v321 = vunpack.c.0.s8 %v320
    %v322 = vlaneseq
    %v323 = vshrl.u32 %v322, 7
    %v324 = vsub.s32 %v321, %v323
    %v325 = vrot.slane %v297, %v324
    %v326 = vcombine.high %v304, %v304
    %v327 = vcombine.high %v311, %v311
    %v328 = vcombine.high %v318, %v318
    %v531 = vunpack.c.l.b16 %v62
    %v532 = vunpack.c.h.b16 %v62
    %v533 = vunpack.c.l.b16 %v63
    %v534 = vunpack.c.h.b16 %v63
    %v535 = vunpack.c.l.b16 %v64
    %v536 = vunpack.c.h.b16 %v64
    %v537 = vunpack.c.l.b16 %v65
    %v538 = vunpack.c.h.b16 %v65
    %v539 = vunpack.c.l.b16 %v66
    %v540 = vunpack.c.h.b16 %v66
    %v541 = vunpack.c.l.b16 %v67
    %v542 = vunpack.c.h.b16 %v67
    %v543 = vunpack.c.l.b16 %v68
    %v544 = vunpack.c.h.b16 %v68
    %v545 = vunpack.c.l.b16 %v69
    %v546 = vunpack.c.h.b16 %v69
    %v547 = vunpack.c.l.b16 %v70
    %v548 = vunpack.c.h.b16 %v70
    %v549 = vunpack.c.l.b16 %v71
    %v550 = vunpack.c.h.b16 %v71
    %v551 = vunpack.c.l.b16 %v72
    %v552 = vunpack.c.h.b16 %v72
    %v553 = vunpack.c.l.b16 %v73
    %v554 = vunpack.c.h.b16 %v73
    %v555 = vunpack.c.l.b16 %v74
    %v556 = vunpack.c.h.b16 %v74
    %v557 = vunpack.c.l.b16 %v75
    %v558 = vunpack.c.h.b16 %v75
    %v559 = vunpack.c.l.b16 %v76
    %v560 = vunpack.c.h.b16 %v76
    %v561 = vunpack.c.l.b16 %v77
    %v562 = vunpack.c.h.b16 %v77
    %v563 = vunpack.c.l.b16 %v78
    %v564 = vunpack.c.h.b16 %v78
    %v565 = vunpack.c.l.b16 %v79
    %v566 = vunpack.c.h.b16 %v79
    %v567 = vunpack.c.l.b16 %v80
    %v568 = vunpack.c.h.b16 %v80
    %v569 = vunpack.c.l.b16 %v81
    %v570 = vunpack.c.h.b16 %v81
    %v571 = vunpack.c.l.b16 %v82
    %v572 = vunpack.c.h.b16 %v82
    %v573 = vunpack.c.l.b16 %v83
    %v574 = vunpack.c.h.b16 %v83
    %v575 = vunpack.c.l.b16 %v84
    %v576 = vunpack.c.h.b16 %v84
    %v577 = vunpack.c.l.b16 %v85
    %v578 = vunpack.c.h.b16 %v85
    %v579 = vunpack.c.l.b16 %v86
    %v580 = vunpack.c.h.b16 %v86
    %v581 = vunpack.c.l.b16 %v87
    %v582 = vunpack.c.h.b16 %v87
    %v583 = vunpack.c.l.b16 %v88
    %v584 = vunpack.c.h.b16 %v88
    %v585 = vunpack.c.l.b16 %v89
    %v586 = vunpack.c.h.b16 %v89
    %v587 = vunpack.c.l.b16 %v90
    %v588 = vunpack.c.h.b16 %v90
    %v589 = vunpack.c.l.b16 %v91
    %v590 = vunpack.c.h.b16 %v91
    %v591 = vunpack.c.l.b16 %v92
    %v592 = vunpack.c.h.b16 %v92
    %v593 = vunpack.c.l.b16 %v93
    %v594 = vunpack.c.h.b16 %v93
    %v595 = vunpack.c.l.b16 %v94
    %v596 = vunpack.c.h.b16 %v94
    %v597 = vunpack.c.l.b16 %v95
    %v598 = vunpack.c.h.b16 %v95
    %v599 = vunpack.c.l.b16 %v96
    %v600 = vunpack.c.h.b16 %v96
    %v601 = vunpack.c.l.b16 %v97
    %v602 = vunpack.c.h.b16 %v97
    %v603 = vunpack.c.l.b16 %v98
    %v604 = vunpack.c.h.b16 %v98
    %v605 = vunpack.c.l.b16 %v99
    %v606 = vunpack.c.h.b16 %v99
    %v607 = vunpack.c.l.b16 %v100
    %v608 = vunpack.c.h.b16 %v100
    %v609 = vunpack.c.l.b16 %v101
    %v610 = vunpack.c.h.b16 %v101
    %v611 = vunpack.c.l.b16 %v102
    %v612 = vunpack.c.h.b16 %v102
    %v613 = vunpack.c.l.b16 %v103
    %v614 = vunpack.c.h.b16 %v103
    %v615 = vunpack.c.l.b16 %v104
    %v616 = vunpack.c.h.b16 %v104
    %v617 = vunpack.c.l.b16 %v105
    %v618 = vunpack.c.h.b16 %v105
    %v619 = vunpack.c.l.b16 %v106
    %v620 = vunpack.c.h.b16 %v106
    %v621 = vunpack.c.l.b16 %v107
    %v622 = vunpack.c.h.b16 %v107
    %v623 = vunpack.c.l.b16 %v108
    %v624 = vunpack.c.h.b16 %v108
    %v625 = vunpack.c.l.b16 %v109
    %v626 = vunpack.c.h.b16 %v109
    %v627 = vunpack.c.l.b16 %v110
    %v628 = vunpack.c.h.b16 %v110
    %v629 = vunpack.c.l.b16 %v111
    %v630 = vunpack.c.h.b16 %v111
    %v631 = vunpack.c.l.b16 %v112
    %v632 = vunpack.c.h.b16 %v112
    %v633 = vunpack.c.l.b16 %v113
    %v634 = vunpack.c.h.b16 %v113
    %v635 = vunpack.c.l.b16 %v114
    %v636 = vunpack.c.h.b16 %v114
    %v637 = vunpack.c.l.b16 %v115
    %v638 = vunpack.c.h.b16 %v115
    %v639 = vunpack.c.l.b16 %v116
    %v640 = vunpack.c.h.b16 %v116
    %v641 = vunpack.c.l.b16 %v117
    %v642 = vunpack.c.h.b16 %v117
    %v643 = vunpack.c.l.b16 %v118
    %v644 = vunpack.c.h.b16 %v118
    %v645 = vunpack.c.l.b16 %v119
    %v646 = vunpack.c.h.b16 %v119
    %v647 = vunpack.c.l.b16 %v120
    %v648 = vunpack.c.h.b16 %v120
    %v649 = vunpack.c.l.b16 %v121
    %v650 = vunpack.c.h.b16 %v121
    %v651 = vunpack.c.l.b16 %v122
    %v652 = vunpack.c.h.b16 %v122
    %v653 = vunpack.c.l.b16 %v123
    %v654 = vunpack.c.h.b16 %v123
    %v655 = vunpack.c.l.b16 %v124
    %v656 = vunpack.c.h.b16 %v124
    %v657 = vunpack.c.l.b16 %v125
    %v658 = vunpack.c.h.b16 %v125
    %v659 = vunpack.c.l.b16 %v126
    %v660 = vunpack.c.h.b16 %v126
    %v661 = vunpack.c.l.b16 %v127
    %v662 = vunpack.c.h.b16 %v127
    %v663 = vunpack.c.l.b16 %v128
    %v664 = vunpack.c.h.b16 %v128
    %v665 = vunpack.c.l.b16 %v129
    %v666 = vunpack.c.h.b16 %v129
    %v667 = vunpack.c.l.b16 %v130
    %v668 = vunpack.c.h.b16 %v130
    %v669 = vunpack.c.l.b16 %v131
    %v670 = vunpack.c.h.b16 %v131
    %v671 = vunpack.c.l.b16 %v132
    %v672 = vunpack.c.h.b16 %v132
    %v673 = vunpack.c.l.b16 %v133
    %v674 = vunpack.c.h.b16 %v133
    %v675 = vunpack.c.l.b16 %v134
    %v676 = vunpack.c.h.b16 %v134
    %v677 = vunpack.c.l.b16 %v135
    %v678 = vunpack.c.h.b16 %v135
    %v679 = vunpack.c.l.b16 %v136
    %v680 = vunpack.c.h.b16 %v136
    %v681 = vunpack.c.l.b16 %v137
    %v682 = vunpack.c.h.b16 %v137
    %v683 = vunpack.c.l.b16 %v138
    %v684 = vunpack.c.h.b16 %v138
    %v685 = vunpack.c.l.b16 %v139
    %v686 = vunpack.c.h.b16 %v139
    %v687 = vunpack.c.l.b16 %v140
    %v688 = vunpack.c.h.b16 %v140
    %v689 = vunpack.c.l.b16 %v141
    %v690 = vunpack.c.h.b16 %v141
    %v691 = vunpack.c.l.b16 %v142
    %v692 = vunpack.c.h.b16 %v142
    %v693 = vunpack.c.l.b16 %v143
    %v694 = vunpack.c.h.b16 %v143
    %v695 = vunpack.c.l.b16 %v144
    %v696 = vunpack.c.h.b16 %v144
    %v697 = vunpack.c.l.b16 %v145
    %v698 = vunpack.c.h.b16 %v145
    %v699 = vunpack.c.l.b16 %v146
    %v700 = vunpack.c.h.b16 %v146
    %v701 = vunpack.c.l.b16 %v147
    %v702 = vunpack.c.h.b16 %v147
    %v703 = vunpack.c.l.b16 %v148
    %v704 = vunpack.c.h.b16 %v148
    %v705 = vunpack.c.l.b16 %v149
    %v706 = vunpack.c.h.b16 %v149
    %v707 = vunpack.c.l.b16 %v150
    %v708 = vunpack.c.h.b16 %v150
    %v709 = vunpack.c.l.b16 %v151
    %v710 = vunpack.c.h.b16 %v151
    %v711 = vunpack.c.l.b16 %v152
    %v712 = vunpack.c.h.b16 %v152
    %v713 = vunpack.c.l.b16 %v153
    %v714 = vunpack.c.h.b16 %v153
    %v715 = vunpack.c.l.b16 %v154
    %v716 = vunpack.c.h.b16 %v154
    %v717 = vunpack.c.l.b16 %v155
    %v718 = vunpack.c.h.b16 %v155
    %v719 = vunpack.c.l.b16 %v156
    %v720 = vunpack.c.h.b16 %v156
    %v721 = vunpack.c.l.b16 %v157
    %v722 = vunpack.c.h.b16 %v157
    %v723 = vunpack.c.l.b16 %v158
    %v724 = vunpack.c.h.b16 %v158
    %v725 = vunpack.c.l.b16 %v159
    %v726 = vunpack.c.h.b16 %v159
    %v727 = vunpack.c.l.b16 %v160
    %v728 = vunpack.c.h.b16 %v160
    %v729 = vunpack.c.l.b16 %v161
    %v730 = vunpack.c.h.b16 %v161
    %v731 = vunpack.c.l.b16 %v162
    %v732 = vunpack.c.h.b16 %v162
    %v733 = vunpack.c.l.b16 %v163
    %v734 = vunpack.c.h.b16 %v163
    %v735 = vunpack.c.l.b16 %v164
    %v736 = vunpack.c.h.b16 %v164
    %v737 = vunpack.c.l.b16 %v165
    %v738 = vunpack.c.h.b16 %v165
    %v739 = vunpack.c.l.b16 %v166
    %v740 = vunpack.c.h.b16 %v166
    %v741 = vunpack.c.l.b16 %v167
    %v742 = vunpack.c.h.b16 %v167
    %v743 = vunpack.c.l.b16 %v168
    %v744 = vunpack.c.h.b16 %v168
    %v745 = vunpack.c.l.b16 %v169
    %v746 = vunpack.c.h.b16 %v169
    %v747 = vunpack.c.l.b16 %v170
    %v748 = vunpack.c.h.b16 %v170
    %v749 = vunpack.c.l.b16 %v171
    %v750 = vunpack.c.h.b16 %v171
    %v751 = vunpack.c.l.b16 %v172
    %v752 = vunpack.c.h.b16 %v172
    %v753 = vunpack.c.l.b16 %v173
    %v754 = vunpack.c.h.b16 %v173
    %v755 = vunpack.c.l.b16 %v174
    %v756 = vunpack.c.h.b16 %v174
    %v757 = vunpack.c.l.b16 %v175
    %v758 = vunpack.c.h.b16 %v175
    %v759 = vunpack.c.l.b16 %v176
    %v760 = vunpack.c.h.b16 %v176
    %v761 = vunpack.c.l.b16 %v177
    %v762 = vunpack.c.h.b16 %v177
    %v763 = vunpack.c.l.b16 %v178
    %v764 = vunpack.c.h.b16 %v178
    %v765 = vunpack.c.l.b16 %v179
    %v766 = vunpack.c.h.b16 %v179
    %v767 = vunpack.c.l.b16 %v180
    %v768 = vunpack.c.h.b16 %v180
    %v769 = vunpack.c.l.b16 %v181
    %v770 = vunpack.c.h.b16 %v181
    %v771 = vunpack.c.l.b16 %v182
    %v772 = vunpack.c.h.b16 %v182
    %v773 = vunpack.c.l.b16 %v183
    %v774 = vunpack.c.h.b16 %v183
    %v775 = vunpack.c.l.b16 %v184
    %v776 = vunpack.c.h.b16 %v184
    %v777 = vunpack.c.l.b16 %v185
    %v778 = vunpack.c.h.b16 %v185
    %v779 = vunpack.c.l.b16 %v186
    %v780 = vunpack.c.h.b16 %v186
    %v781 = vunpack.c.l.b16 %v187
    %v782 = vunpack.c.h.b16 %v187
    %v783 = vunpack.c.l.b16 %v188
    %v784 = vunpack.c.h.b16 %v188
    %v785 = vunpack.c.l.b16 %v189
    %v786 = vunpack.c.h.b16 %v189
    %v787 = vunpack.c.l.b16 %v190
    %v788 = vunpack.c.h.b16 %v190
    %v789 = vunpack.c.l.b16 %v191
    %v790 = vunpack.c.h.b16 %v191
    %v791 = vunpack.c.l.b16 %v192
    %v792 = vunpack.c.h.b16 %v192
    %v793 = vunpack.c.l.b16 %v193
    %v794 = vunpack.c.h.b16 %v193
    %v795 = vunpack.c.l.b16 %v194
    %v796 = vunpack.c.h.b16 %v194
    %v797 = vunpack.c.l.b16 %v195
    %v798 = vunpack.c.h.b16 %v195
    %v799 = vunpack.c.l.b16 %v196
    %v800 = vunpack.c.h.b16 %v196
    %v801 = vunpack.c.l.b16 %v197
    %v802 = vunpack.c.h.b16 %v197
    %v803 = vunpack.c.l.b16 %v198
    %v804 = vunpack.c.h.b16 %v198
    %v805 = vunpack.c.l.b16 %v199
    %v806 = vunpack.c.h.b16 %v199
    %v807 = vunpack.c.l.b16 %v200
    %v808 = vunpack.c.h.b16 %v200
    %v809 = vunpack.c.l.b16 %v201
    %v810 = vunpack.c.h.b16 %v201
    %v811 = vunpack.c.l.b16 %v202
    %v812 = vunpack.c.h.b16 %v202
    %v813 = vunpack.c.l.b16 %v203
    %v814 = vunpack.c.h.b16 %v203
    %v815 = vunpack.c.l.b16 %v204
    %v816 = vunpack.c.h.b16 %v204
    %v817 = vunpack.c.l.b16 %v205
    %v818 = vunpack.c.h.b16 %v205
    %v819 = vunpack.c.l.b16 %v206
    %v820 = vunpack.c.h.b16 %v206
    %v821 = vunpack.c.l.b16 %v207
    %v822 = vunpack.c.h.b16 %v207
    %v823 = vunpack.c.l.b16 %v208
    %v824 = vunpack.c.h.b16 %v208
    %v825 = vunpack.c.l.b16 %v209
    %v826 = vunpack.c.h.b16 %v209
    %v827 = vunpack.c.l.b16 %v210
    %v828 = vunpack.c.h.b16 %v210
    %v829 = vunpack.c.l.b16 %v211
    %v830 = vunpack.c.h.b16 %v211
    %v831 = vunpack.c.l.b16 %v212
    %v832 = vunpack.c.h.b16 %v212
    %v833 = vunpack.c.l.b16 %v213
    %v834 = vunpack.c.h.b16 %v213
    %v835 = vunpack.c.l.b16 %v214
    %v836 = vunpack.c.h.b16 %v214
    %v837 = vunpack.c.l.b16 %v215
    %v838 = vunpack.c.h.b16 %v215
    %v839 = vunpack.c.l.b16 %v216
    %v840 = vunpack.c.h.b16 %v216
    %v841 = vunpack.c.l.b16 %v217
    %v842 = vunpack.c.h.b16 %v217
    %v843 = vunpack.c.l.b16 %v218
    %v844 = vunpack.c.h.b16 %v218
    %v845 = vunpack.c.l.b16 %v219
    %v846 = vunpack.c.h.b16 %v219
    %v847 = vunpack.c.l.b16 %v220
    %v848 = vunpack.c.h.b16 %v220
    %v849 = vunpack.c.l.b16 %v221
    %v850 = vunpack.c.h.b16 %v221
    %v851 = vunpack.c.l.b16 %v222
    %v852 = vunpack.c.h.b16 %v222
    %v853 = vunpack.c.l.b16 %v223
    %v854 = vunpack.c.h.b16 %v223
    %v855 = vunpack.c.l.b16 %v224
    %v856 = vunpack.c.h.b16 %v224
    %v857 = vunpack.c.l.b16 %v225
    %v858 = vunpack.c.h.b16 %v225
    %v859 = vunpack.c.l.b16 %v226
    %v860 = vunpack.c.h.b16 %v226
    %v861 = vunpack.c.l.b16 %v227
    %v862 = vunpack.c.h.b16 %v227
    %v863 = vunpack.c.l.b16 %v228
    %v864 = vunpack.c.h.b16 %v228
    %v865 = vunpack.c.l.b16 %v229
    %v866 = vunpack.c.h.b16 %v229
    %v867 = vunpack.c.l.b16 %v230
    %v868 = vunpack.c.h.b16 %v230
    %v869 = vunpack.c.l.b16 %v231
    %v870 = vunpack.c.h.b16 %v231
    %v871 = vunpack.c.l.b16 %v232
    %v872 = vunpack.c.h.b16 %v232
    %v873 = vunpack.c.l.b16 %v233
    %v874 = vunpack.c.h.b16 %v233
    %v875 = vunpack.c.l.b16 %v234
    %v876 = vunpack.c.h.b16 %v234
    %v877 = vunpack.c.l.b16 %v235
    %v878 = vunpack.c.h.b16 %v235
    %v879 = vunpack.c.l.b16 %v236
    %v880 = vunpack.c.h.b16 %v236
    %v881 = vunpack.c.l.b16 %v237
    %v882 = vunpack.c.h.b16 %v237
    %v883 = vunpack.c.l.b16 %v238
    %v884 = vunpack.c.h.b16 %v238
    %v885 = vunpack.c.l.b16 %v239
    %v886 = vunpack.c.h.b16 %v239
    %v887 = vunpack.c.l.b16 %v240
    %v888 = vunpack.c.h.b16 %v240
    %v889 = vunpack.c.l.b16 %v241
    %v890 = vunpack.c.h.b16 %v241
    %v891 = vunpack.c.l.b16 %v242
    %v892 = vunpack.c.h.b16 %v242
    %v893 = vunpack.c.l.b16 %v243
    %v894 = vunpack.c.h.b16 %v243
    %v895 = vunpack.c.l.b16 %v244
    %v896 = vunpack.c.h.b16 %v244
    %v897 = vunpack.c.l.b16 %v245
    %v898 = vunpack.c.h.b16 %v245
    %v899 = vunpack.c.l.b16 %v246
    %v900 = vunpack.c.h.b16 %v246
    %v901 = vunpack.c.l.b16 %v247
    %v902 = vunpack.c.h.b16 %v247
    %v903 = vunpack.c.l.b16 %v248
    %v904 = vunpack.c.h.b16 %v248
    %v905 = vunpack.c.l.b16 %v249
    %v906 = vunpack.c.h.b16 %v249
    %v907 = vunpack.c.l.b16 %v250
    %v908 = vunpack.c.h.b16 %v250
    %v909 = vunpack.c.l.b16 %v251
    %v910 = vunpack.c.h.b16 %v251
    %v911 = vunpack.c.l.b16 %v252
    %v912 = vunpack.c.h.b16 %v252
    %v913 = vunpack.c.l.b16 %v253
    %v914 = vunpack.c.h.b16 %v253
    %v915 = vunpack.c.l.b16 %v254
    %v916 = vunpack.c.h.b16 %v254
    %v917 = vunpack.c.l.b16 %v255
    %v918 = vunpack.c.h.b16 %v255
    %v919 = vunpack.c.l.b16 %v256
    %v920 = vunpack.c.h.b16 %v256
    %v921 = vunpack.c.l.b16 %v257
    %v922 = vunpack.c.h.b16 %v257
    %v923 = vpack.c.b16 %v535, %v531
    %v924 = vpack.c.b16 %v536, %v532
    %v925 = vpack.c.b16 %v537, %v533
    %v926 = vpack.c.b16 %v538, %v534
    %v927 = vpack.c.b16 %v543, %v539
    %v928 = vpack.c.b16 %v544, %v540
    %v929 = vpack.c.b16 %v545, %v541
    %v930 = vpack.c.b16 %v546, %v542
    %v931 = vpack.c.b16 %v551, %v547
    %v932 = vpack.c.b16 %v552, %v548
    %v933 = vpack.c.b16 %v553, %v549
    %v934 = vpack.c.b16 %v554, %v550
    %v935 = vpack.c.b16 %v559, %v555
    %v936 = vpack.c.b16 %v560, %v556
    %v937 = vpack.c.b16 %v561, %v557
    %v938 = vpack.c.b16 %v562, %v558
    %v939 = vpack.c.b16 %v567, %v563
    %v940 = vpack.c.b16 %v568, %v564
    %v941 = vpack.c.b16 %v569, %v565
    %v942 = vpack.c.b16 %v570, %v566
    %v943 = vpack.c.b16 %v575, %v571
    %v944 = vpack.c.b16 %v576, %v572
    %v945 = vpack.c.b16 %v577, %v573
    %v946 = vpack.c.b16 %v578, %v574
    %v947 = vpack.c.b16 %v583, %v579
    %v948 = vpack.c.b16 %v584, %v580
    %v949 = vpack.c.b16 %v585, %v581
    %v950 = vpack.c.b16 %v586, %v582
    %v951 = vpack.c.b16 %v591, %v587
    %v952 = vpack.c.b16 %v592, %v588
    %v953 = vpack.c.b16 %v593, %v589
    %v954 = vpack.c.b16 %v594, %v590
    %v955 = vpack.c.b16 %v599, %v595
    %v956 = vpack.c.b16 %v600, %v596
    %v957 = vpack.c.b16 %v601, %v597
    %v958 = vpack.c.b16 %v602, %v598
    %v959 = vpack.c.b16 %v607, %v603
    %v960 = vpack.c.b16 %v608, %v604
    %v961 = vpack.c.b16 %v609, %v605
    %v962 = vpack.c.b16 %v610, %v606
    %v963 = vpack.c.b16 %v615, %v611
    %v964 = vpack.c.b16 %v616, %v612
    %v965 = vpack.c.b16 %v617, %v613
    %v966 = vpack.c.b16 %v618, %v614
    %v967 = vpack.c.b16 %v623, %v619
    %v968 = vpack.c.b16 %v624, %v620
    %v969 = vpack.c.b16 %v625, %v621
    %v970 = vpack.c.b16 %v626, %v622
    %v971 = vpack.c.b16 %v631, %v627
    %v972 = vpack.c.b16 %v632, %v628
    %v973 = vpack.c.b16 %v633, %v629
    %v974 = vpack.c.b16 %v634, %v630
    %v975 = vpack.c.b16 %v639, %v635
    %v976 = vpack.c.b16 %v640, %v636
    %v977 = vpack.c.b16 %v641, %v637
    %v978 = vpack.c.b16 %v642, %v638
    %v979 = vpack.c.b16 %v647, %v643
    %v980 = vpack.c.b16 %v648, %v644
    %v981 = vpack.c.b16 %v649, %v645
    %v982 = vpack.c.b16 %v650, %v646
    %v983 = vpack.c.b16 %v655, %v651
    %v984 = vpack.c.b16 %v656, %v652
    %v985 = vpack.c.b16 %v657, %v653
    %v986 = vpack.c.b16 %v658, %v654
    %v987 = vpack.c.b16 %v663, %v659
    %v988 = vpack.c.b16 %v664, %v660
    %v989 = vpack.c.b16 %v665, %v661
    %v990 = vpack.c.b16 %v666, %v662
    %v991 = vpack.c.b16 %v671, %v667
    %v992 = vpack.c.b16 %v672, %v668
    %v993 = vpack.c.b16 %v673, %v669
    %v994 = vpack.c.b16 %v674, %v670
    %v995 = vpack.c.b16 %v679, %v675
    %v996 = vpack.c.b16 %v680, %v676
    %v997 = vpack.c.b16 %v681, %v677
    %v998 = vpack.c.b16 %v682, %v678
    %v999 = vpack.c.b16 %v687, %v683
    %v1000 = vpack.c.b16 %v688, %v684
    %v1001 = vpack.c.b16 %v689, %v685
    %v1002 = vpack.c.b16 %v690, %v686
    %v1003 = vpack.c.b16 %v695, %v691
    %v1004 = vpack.c.b16 %v696, %v692
    %v1005 = vpack.c.b16 %v697, %v693
    %v1006 = vpack.c.b16 %v698, %v694
    %v1007 = vpack.c.b16 %v703, %v699
    %v1008 = vpack.c.b16 %v704, %v700
    %v1009 = vpack.c.b16 %v705, %v701
    %v1010 = vpack.c.b16 %v706, %v702
    %v1011 = vpack.c.b16 %v711, %v707
    %v1012 = vpack.c.b16 %v712, %v708
    %v1013 = vpack.c.b16 %v713, %v709
    %v1014 = vpack.c.b16 %v714, %v710
    %v1015 = vpack.c.b16 %v719, %v715
    %v1016 = vpack.c.b16 %v720, %v716
    %v1017 = vpack.c.b16 %v721, %v717
    %v1018 = vpack.c.b16 %v722, %v718
    %v1019 = vpack.c.b16 %v727, %v723
    %v1020 = vpack.c.b16 %v728, %v724
    %v1021 = vpack.c.b16 %v729, %v725
    %v1022 = vpack.c.b16 %v730, %v726
    %v1023 = vpack.c.b16 %v735, %v731
    %v1024 = vpack.c.b16 %v736, %v732
    %v1025 = vpack.c.b16 %v737, %v733
    %v1026 = vpack.c.b16 %v738, %v734
    %v1027 = vpack.c.b16 %v743, %v739
    %v1028 = vpack.c.b16 %v744, %v740
    %v1029 = vpack.c.b16 %v745, %v741
    %v1030 = vpack.c.b16 %v746, %v742
    %v1031 = vpack.c.b16 %v751, %v747
    %v1032 = vpack.c.b16 %v752, %v748
    %v1033 = vpack.c.b16 %v753, %v749
    %v1034 = vpack.c.b16 %v754, %v750
    %v1035 = vpack.c.b16 %v759, %v755
    %v1036 = vpack.c.b16 %v760, %v756
    %v1037 = vpack.c.b16 %v761, %v757
    %v1038 = vpack.c.b16 %v762, %v758
    %v1039 = vpack.c.b16 %v767, %v763
    %v1040 = vpack.c.b16 %v768, %v764
    %v1041 = vpack.c.b16 %v769, %v765
    %v1042 = vpack.c.b16 %v770, %v766
    %v1043 = vpack.c.b16 %v775, %v771
    %v1044 = vpack.c.b16 %v776, %v772
    %v1045 = vpack.c.b16 %v777, %v773
    %v1046 = vpack.c.b16 %v778, %v774
    %v1047 = vpack.c.b16 %v783, %v779
    %v1048 = vpack.c.b16 %v784, %v780
    %v1049 = vpack.c.b16 %v785, %v781
    %v1050 = vpack.c.b16 %v786, %v782
    %v1051 = vpack.c.b16 %v791, %v787
    %v1052 = vpack.c.b16 %v792, %v788
    %v1053 = vpack.c.b16 %v793, %v789
    %v1054 = vpack.c.b16 %v794, %v790
    %v1055 = vpack.c.b16 %v799, %v795
    %v1056 = vpack.c.b16 %v800, %v796
    %v1057 = vpack.c.b16 %v801, %v797
    %v1058 = vpack.c.b16 %v802, %v798
    %v1059 = vpack.c.b16 %v807, %v803
    %v1060 = vpack.c.b16 %v808, %v804
    %v1061 = vpack.c.b16 %v809, %v805
    %v1062 = vpack.c.b16 %v810, %v806
    %v1063 = vpack.c.b16 %v815, %v811
    %v1064 = vpack.c.b16 %v816, %v812
    %v1065 = vpack.c.b16 %v817, %v813
    %v1066 = vpack.c.b16 %v818, %v814
    %v1067 = vpack.c.b16 %v823, %v819
    %v1068 = vpack.c.b16 %v824, %v820
    %v1069 = vpack.c.b16 %v825, %v821
    %v1070 = vpack.c.b16 %v826, %v822
    %v1071 = vpack.c.b16 %v831, %v827
    %v1072 = vpack.c.b16 %v832, %v828
    %v1073 = vpack.c.b16 %v833, %v829
    %v1074 = vpack.c.b16 %v834, %v830
    %v1075 = vpack.c.b16 %v839, %v835
    %v1076 = vpack.c.b16 %v840, %v836
    %v1077 = vpack.c.b16 %v841, %v837
    %v1078 = vpack.c.b16 %v842, %v838
    %v1079 = vpack.c.b16 %v847, %v843
    %v1080 = vpack.c.b16 %v848, %v844
    %v1081 = vpack.c.b16 %v849, %v845
    %v1082 = vpack.c.b16 %v850, %v846
    %v1083 = vpack.c.b16 %v855, %v851
    %v1084 = vpack.c.b16 %v856, %v852
    %v1085 = vpack.c.b16 %v857, %v853
    %v1086 = vpack.c.b16 %v858, %v854
    %v1087 = vpack.c.b16 %v863, %v859
    %v1088 = vpack.c.b16 %v864, %v860
    %v1089 = vpack.c.b16 %v865, %v861
    %v1090 = vpack.c.b16 %v866, %v862
    %v1091 = vpack.c.b16 %v871, %v867
    %v1092 = vpack.c.b16 %v872, %v868
    %v1093 = vpack.c.b16 %v873, %v869
    %v1094 = vpack.c.b16 %v874, %v870
    %v1095 = vpack.c.b16 %v879, %v875
    %v1096 = vpack.c.b16 %v880, %v876
    %v1097 = vpack.c.b16 %v881, %v877
    %v1098 = vpack.c.b16 %v882, %v878
    %v1099 = vpack.c.b16 %v887, %v883
    %v1100 = vpack.c.b16 %v888, %v884
    %v1101 = vpack.c.b16 %v889, %v885
    %v1102 = vpack.c.b16 %v890, %v886
    %v1103 = vpack.c.b16 %v895, %v891
    %v1104 = vpack.c.b16 %v896, %v892
    %v1105 = vpack.c.b16 %v897, %v893
    %v1106 = vpack.c.b16 %v898, %v894
    %v1107 = vpack.c.b16 %v903, %v899
    %v1108 = vpack.c.b16 %v904, %v900
    %v1109 = vpack.c.b16 %v905, %v901
    %v1110 = vpack.c.b16 %v906, %v902
    %v1111 = vpack.c.b16 %v911, %v907
    %v1112 = vpack.c.b16 %v912, %v908
    %v1113 = vpack.c.b16 %v913, %v909
    %v1114 = vpack.c.b16 %v914, %v910
    %v1115 = vpack.c.b16 %v919, %v915
    %v1116 = vpack.c.b16 %v920, %v916
    %v1117 = vpack.c.b16 %v921, %v917
    %v1118 = vpack.c.b16 %v922, %v918
    %vm1315 = vcmask 130048
    %v1317 = vsel %vm1315, %v327, 0
    %1319 = vmatprep.subr.bf16.mxu0 %v924
    %1320 = vmatpush1.bf16.msra.mxu0 %v923
    %1321 = vmatprep.subr.bf16.mxu0 %v928
    %1322 = vmatpush1.bf16.msra.mxu0 %v927
    %1323 = vmatprep.subr.bf16.mxu0 %v932
    %1324 = vmatpush1.bf16.msra.mxu0 %v931
    %1325 = vmatprep.subr.bf16.mxu0 %v936
    %1326 = vmatpush1.bf16.msra.mxu0 %v935
    %1327 = vmatprep.subr.bf16.mxu0 %v940
    %1328 = vmatpush1.bf16.msra.mxu0 %v939
    %1329 = vmatprep.subr.bf16.mxu0 %v944
    %1330 = vmatpush1.bf16.msra.mxu0 %v943
    %1331 = vmatprep.subr.bf16.mxu0 %v948
    %1332 = vmatpush1.bf16.msra.mxu0 %v947
    %1333 = vmatprep.subr.bf16.mxu0 %v952
    %1334 = vmatpush1.bf16.msra.mxu0 %v951
    %1335 = vmatprep.subr.bf16.mxu0 %v956
    %1336 = vmatpush1.bf16.msra.mxu0 %v955
    %1337 = vmatprep.subr.bf16.mxu0 %v960
    %1338 = vmatpush1.bf16.msra.mxu0 %v959
    %1339 = vmatprep.subr.bf16.mxu0 %v964
    %1340 = vmatpush1.bf16.msra.mxu0 %v963
    %1341 = vmatprep.subr.bf16.mxu0 %v968
    %1342 = vmatpush1.bf16.msra.mxu0 %v967
    %1343 = vmatprep.subr.bf16.mxu0 %v972
    %1344 = vmatpush1.bf16.msra.mxu0 %v971
    %1345 = vmatprep.subr.bf16.mxu0 %v976
    %1346 = vmatpush1.bf16.msra.mxu0 %v975
    %1347 = vmatprep.subr.bf16.mxu0 %v980
    %1348 = vmatpush1.bf16.msra.mxu0 %v979
    %1349 = vmatprep.subr.bf16.mxu0 %v984
    %1350 = vmatpush1.bf16.msra.mxu0 %v983
    %1351 = vmatprep.mubr.bf16.mxu0 %v318
    %1352 = vmatmul.mubr.bf16.gmra.mrb[0].mxu0 %v304
    %v1353 = vpop.f32.mrb[0].mxu0
    %v1354 = vadd.f32 %v263, %v1353
    %v1355 = vpop.f32.mrb[0].mxu0
    %v1356 = vadd.f32 %v267, %v1355
    %v1357 = vpop.f32.mrb[0].mxu0
    %v1358 = vpop.f32.mrb[0].mxu0
    %1359 = vdwg.mxu0
    %1360 = vmatprep.subr.bf16.mxu0 %v988
    %1361 = vmatpush1.bf16.msra.mxu0 %v987
    %1362 = vmatprep.subr.bf16.mxu0 %v992
    %1363 = vmatpush1.bf16.msra.mxu0 %v991
    %1364 = vmatprep.subr.bf16.mxu0 %v996
    %1365 = vmatpush1.bf16.msra.mxu0 %v995
    %1366 = vmatprep.subr.bf16.mxu0 %v1000
    %1367 = vmatpush1.bf16.msra.mxu0 %v999
    %1368 = vmatprep.subr.bf16.mxu0 %v1004
    %1369 = vmatpush1.bf16.msra.mxu0 %v1003
    %1370 = vmatprep.subr.bf16.mxu0 %v1008
    %1371 = vmatpush1.bf16.msra.mxu0 %v1007
    %1372 = vmatprep.subr.bf16.mxu0 %v1012
    %1373 = vmatpush1.bf16.msra.mxu0 %v1011
    %1374 = vmatprep.subr.bf16.mxu0 %v1016
    %1375 = vmatpush1.bf16.msra.mxu0 %v1015
    %1376 = vmatprep.subr.bf16.mxu0 %v1020
    %1377 = vmatpush1.bf16.msra.mxu0 %v1019
    %1378 = vmatprep.subr.bf16.mxu0 %v1024
    %1379 = vmatpush1.bf16.msra.mxu0 %v1023
    %1380 = vmatprep.subr.bf16.mxu0 %v1028
    %1381 = vmatpush1.bf16.msra.mxu0 %v1027
    %1382 = vmatprep.subr.bf16.mxu0 %v1032
    %1383 = vmatpush1.bf16.msra.mxu0 %v1031
    %1384 = vmatprep.subr.bf16.mxu0 %v1036
    %1385 = vmatpush1.bf16.msra.mxu0 %v1035
    %1386 = vmatprep.subr.bf16.mxu0 %v1040
    %1387 = vmatpush1.bf16.msra.mxu0 %v1039
    %1388 = vmatprep.subr.bf16.mxu0 %v1044
    %1389 = vmatpush1.bf16.msra.mxu0 %v1043
    %1390 = vmatprep.subr.bf16.mxu0 %v1048
    %1391 = vmatpush1.bf16.msra.mxu0 %v1047
    %1392 = vmatprep.mubr.bf16.mxu0 %v328
    %1393 = vmatmul.mubr.bf16.gmra.mrb[0].mxu0 %v326
    %v1394 = vpop.f32.mrb[0].mxu0
    %v1395 = vadd.f32 %v1354, %v1394
    %v1396 = vpop.f32.mrb[0].mxu0
    %v1397 = vadd.f32 %v1356, %v1396
    %v1398 = vpop.f32.mrb[0].mxu0
    %v1399 = vpop.f32.mrb[0].mxu0
    %1400 = vdwg.mxu0
    %1401 = vmatprep.subr.bf16.mxu0 %v1052
    %1402 = vmatpush1.bf16.msra.mxu0 %v1051
    %1403 = vmatprep.subr.bf16.mxu0 %v1056
    %1404 = vmatpush1.bf16.msra.mxu0 %v1055
    %1405 = vmatprep.subr.bf16.mxu0 %v1060
    %1406 = vmatpush1.bf16.msra.mxu0 %v1059
    %1407 = vmatprep.subr.bf16.mxu0 %v1064
    %1408 = vmatpush1.bf16.msra.mxu0 %v1063
    %1409 = vmatprep.subr.bf16.mxu0 %v1068
    %1410 = vmatpush1.bf16.msra.mxu0 %v1067
    %1411 = vmatprep.subr.bf16.mxu0 %v1072
    %1412 = vmatpush1.bf16.msra.mxu0 %v1071
    %1413 = vmatprep.subr.bf16.mxu0 %v1076
    %1414 = vmatpush1.bf16.msra.mxu0 %v1075
    %1415 = vmatprep.subr.bf16.mxu0 %v1080
    %1416 = vmatpush1.bf16.msra.mxu0 %v1079
    %1417 = vmatprep.subr.bf16.mxu0 %v1084
    %1418 = vmatpush1.bf16.msra.mxu0 %v1083
    %1419 = vmatprep.subr.bf16.mxu0 %v1088
    %1420 = vmatpush1.bf16.msra.mxu0 %v1087
    %1421 = vmatprep.subr.bf16.mxu0 %v1092
    %1422 = vmatpush1.bf16.msra.mxu0 %v1091
    %1423 = vmatprep.subr.bf16.mxu0 %v1096
    %1424 = vmatpush1.bf16.msra.mxu0 %v1095
    %1425 = vmatprep.subr.bf16.mxu0 %v1100
    %1426 = vmatpush1.bf16.msra.mxu0 %v1099
    %1427 = vmatprep.subr.bf16.mxu0 %v1104
    %1428 = vmatpush1.bf16.msra.mxu0 %v1103
    %1429 = vmatprep.subr.bf16.mxu0 %v1108
    %1430 = vmatpush1.bf16.msra.mxu0 %v1107
    %1431 = vmatprep.subr.bf16.mxu0 %v1112
    %1432 = vmatpush1.bf16.msra.mxu0 %v1111
    %1433 = vmatprep.mubr.bf16.mxu0 %v325
    %1434 = vmatmul.mubr.bf16.gmra.mrb[0].mxu0 %v311
    %v1435 = vpop.f32.mrb[0].mxu0
    %v1436 = vadd.f32 %v1395, %v1435
    %v1437 = vpop.f32.mrb[0].mxu0
    %v1438 = vadd.f32 %v1397, %v1437
    %v1439 = vpop.f32.mrb[0].mxu0
    %v1440 = vpop.f32.mrb[0].mxu0
    %1441 = vdwg.mxu0
    %1442 = vmatprep.subr.bf16.mxu0 %v1116
    %1443 = vmatpush1.bf16.msra.mxu0 %v1115
    %1444 = vmatprep.subr.bf16.mxu0 0
    %1445 = vmatpush1.bf16.msra.mxu0 0
    %1446 = vmatprep.subr.bf16.mxu0 0
    %1447 = vmatpush1.bf16.msra.mxu0 0
    %1448 = vmatprep.subr.bf16.mxu0 0
    %1449 = vmatpush1.bf16.msra.mxu0 0
    %1450 = vmatprep.subr.bf16.mxu0 0
    %1451 = vmatpush1.bf16.msra.mxu0 0
    %1452 = vmatprep.subr.bf16.mxu0 0
    %1453 = vmatpush1.bf16.msra.mxu0 0
    %1454 = vmatprep.subr.bf16.mxu0 0
    %1455 = vmatpush1.bf16.msra.mxu0 0
    %1456 = vmatprep.subr.bf16.mxu0 0
    %1457 = vmatpush1.bf16.msra.mxu0 0
    %1458 = vmatprep.subr.bf16.mxu0 0
    %1459 = vmatpush1.bf16.msra.mxu0 0
    %1460 = vmatprep.subr.bf16.mxu0 0
    %1461 = vmatpush1.bf16.msra.mxu0 0
    %1462 = vmatprep.subr.bf16.mxu0 0
    %1463 = vmatpush1.bf16.msra.mxu0 0
    %1464 = vmatprep.subr.bf16.mxu0 0
    %1465 = vmatpush1.bf16.msra.mxu0 0
    %1466 = vmatprep.subr.bf16.mxu0 0
    %1467 = vmatpush1.bf16.msra.mxu0 0
    %1468 = vmatprep.subr.bf16.mxu0 0
    %1469 = vmatpush1.bf16.msra.mxu0 0
    %1470 = vmatprep.subr.bf16.mxu0 0
    %1471 = vmatpush1.bf16.msra.mxu0 0
    %1472 = vmatprep.subr.bf16.mxu0 0
    %1473 = vmatpush1.bf16.msra.mxu0 0
    %1474 = vmatprep.mubr.bf16.mxu0 0
    %1475 = vmatmul.mubr.bf16.gmra.mrb[0].mxu0 %v1317
    %v1476 = vpop.f32.mrb[0].mxu0
    %v1477 = vadd.f32 %v1436, %v1476
    %v1478 = vpop.f32.mrb[0].mxu0
    %v1479 = vadd.f32 %v1438, %v1478
    %v1480 = vpop.f32.mrb[0].mxu0
    %v1481 = vpop.f32.mrb[0].mxu0
    %1482 = vdwg.mxu0
    %1483 = vmatprep.subr.bf16.mxu0 %v926
    %1484 = vmatpush1.bf16.msra.mxu0 %v925
    %1485 = vmatprep.subr.bf16.mxu0 %v930
    %1486 = vmatpush1.bf16.msra.mxu0 %v929
    %1487 = vmatprep.subr.bf16.mxu0 %v934
    %1488 = vmatpush1.bf16.msra.mxu0 %v933
    %1489 = vmatprep.subr.bf16.mxu0 %v938
    %1490 = vmatpush1.bf16.msra.mxu0 %v937
    %1491 = vmatprep.subr.bf16.mxu0 %v942
    %1492 = vmatpush1.bf16.msra.mxu0 %v941
    %1493 = vmatprep.subr.bf16.mxu0 %v946
    %1494 = vmatpush1.bf16.msra.mxu0 %v945
    %1495 = vmatprep.subr.bf16.mxu0 %v950
    %1496 = vmatpush1.bf16.msra.mxu0 %v949
    %1497 = vmatprep.subr.bf16.mxu0 %v954
    %1498 = vmatpush1.bf16.msra.mxu0 %v953
    %1499 = vmatprep.subr.bf16.mxu0 %v958
    %1500 = vmatpush1.bf16.msra.mxu0 %v957
    %1501 = vmatprep.subr.bf16.mxu0 %v962
    %1502 = vmatpush1.bf16.msra.mxu0 %v961
    %1503 = vmatprep.subr.bf16.mxu0 %v966
    %1504 = vmatpush1.bf16.msra.mxu0 %v965
    %1505 = vmatprep.subr.bf16.mxu0 %v970
    %1506 = vmatpush1.bf16.msra.mxu0 %v969
    %1507 = vmatprep.subr.bf16.mxu0 %v974
    %1508 = vmatpush1.bf16.msra.mxu0 %v973
    %1509 = vmatprep.subr.bf16.mxu0 %v978
    %1510 = vmatpush1.bf16.msra.mxu0 %v977
    %1511 = vmatprep.subr.bf16.mxu0 %v982
    %1512 = vmatpush1.bf16.msra.mxu0 %v981
    %1513 = vmatprep.subr.bf16.mxu0 %v986
    %1514 = vmatpush1.bf16.msra.mxu0 %v985
    %1515 = vmatprep.mubr.bf16.mxu0 %v318
    %1516 = vmatmul.mubr.bf16.gmra.mrb[0].mxu0 %v304
    %v1517 = vpop.f32.mrb[0].mxu0
    %v1518 = vadd.f32 %v271, %v1517
    %v1519 = vpop.f32.mrb[0].mxu0
    %v1520 = vadd.f32 %v275, %v1519
    %v1521 = vpop.f32.mrb[0].mxu0
    %v1522 = vpop.f32.mrb[0].mxu0
    %1523 = vdwg.mxu0
    %1524 = vmatprep.subr.bf16.mxu0 %v990
    %1525 = vmatpush1.bf16.msra.mxu0 %v989
    %1526 = vmatprep.subr.bf16.mxu0 %v994
    %1527 = vmatpush1.bf16.msra.mxu0 %v993
    %1528 = vmatprep.subr.bf16.mxu0 %v998
    %1529 = vmatpush1.bf16.msra.mxu0 %v997
    %1530 = vmatprep.subr.bf16.mxu0 %v1002
    %1531 = vmatpush1.bf16.msra.mxu0 %v1001
    %1532 = vmatprep.subr.bf16.mxu0 %v1006
    %1533 = vmatpush1.bf16.msra.mxu0 %v1005
    %1534 = vmatprep.subr.bf16.mxu0 %v1010
    %1535 = vmatpush1.bf16.msra.mxu0 %v1009
    %1536 = vmatprep.subr.bf16.mxu0 %v1014
    %1537 = vmatpush1.bf16.msra.mxu0 %v1013
    %1538 = vmatprep.subr.bf16.mxu0 %v1018
    %1539 = vmatpush1.bf16.msra.mxu0 %v1017
    %1540 = vmatprep.subr.bf16.mxu0 %v1022
    %1541 = vmatpush1.bf16.msra.mxu0 %v1021
    %1542 = vmatprep.subr.bf16.mxu0 %v1026
    %1543 = vmatpush1.bf16.msra.mxu0 %v1025
    %1544 = vmatprep.subr.bf16.mxu0 %v1030
    %1545 = vmatpush1.bf16.msra.mxu0 %v1029
    %1546 = vmatprep.subr.bf16.mxu0 %v1034
    %1547 = vmatpush1.bf16.msra.mxu0 %v1033
    %1548 = vmatprep.subr.bf16.mxu0 %v1038
    %1549 = vmatpush1.bf16.msra.mxu0 %v1037
    %1550 = vmatprep.subr.bf16.mxu0 %v1042
    %1551 = vmatpush1.bf16.msra.mxu0 %v1041
    %1552 = vmatprep.subr.bf16.mxu0 %v1046
    %1553 = vmatpush1.bf16.msra.mxu0 %v1045
    %1554 = vmatprep.subr.bf16.mxu0 %v1050
    %1555 = vmatpush1.bf16.msra.mxu0 %v1049
    %1556 = vmatprep.mubr.bf16.mxu0 %v328
    %1557 = vmatmul.mubr.bf16.gmra.mrb[0].mxu0 %v326
    %v1558 = vpop.f32.mrb[0].mxu0
    %v1559 = vadd.f32 %v1518, %v1558
    %v1560 = vpop.f32.mrb[0].mxu0
    %v1561 = vadd.f32 %v1520, %v1560
    %v1562 = vpop.f32.mrb[0].mxu0
    %v1563 = vpop.f32.mrb[0].mxu0
    %1564 = vdwg.mxu0
    %1565 = vmatprep.subr.bf16.mxu0 %v1054
    %1566 = vmatpush1.bf16.msra.mxu0 %v1053
    %1567 = vmatprep.subr.bf16.mxu0 %v1058
    %1568 = vmatpush1.bf16.msra.mxu0 %v1057
    %1569 = vmatprep.subr.bf16.mxu0 %v1062
    %1570 = vmatpush1.bf16.msra.mxu0 %v1061
    %1571 = vmatprep.subr.bf16.mxu0 %v1066
    %1572 = vmatpush1.bf16.msra.mxu0 %v1065
    %1573 = vmatprep.subr.bf16.mxu0 %v1070
    %1574 = vmatpush1.bf16.msra.mxu0 %v1069
    %1575 = vmatprep.subr.bf16.mxu0 %v1074
    %1576 = vmatpush1.bf16.msra.mxu0 %v1073
    %1577 = vmatprep.subr.bf16.mxu0 %v1078
    %1578 = vmatpush1.bf16.msra.mxu0 %v1077
    %1579 = vmatprep.subr.bf16.mxu0 %v1082
    %1580 = vmatpush1.bf16.msra.mxu0 %v1081
    %1581 = vmatprep.subr.bf16.mxu0 %v1086
    %1582 = vmatpush1.bf16.msra.mxu0 %v1085
    %1583 = vmatprep.subr.bf16.mxu0 %v1090
    %1584 = vmatpush1.bf16.msra.mxu0 %v1089
    %1585 = vmatprep.subr.bf16.mxu0 %v1094
    %1586 = vmatpush1.bf16.msra.mxu0 %v1093
    %1587 = vmatprep.subr.bf16.mxu0 %v1098
    %1588 = vmatpush1.bf16.msra.mxu0 %v1097
    %1589 = vmatprep.subr.bf16.mxu0 %v1102
    %1590 = vmatpush1.bf16.msra.mxu0 %v1101
    %1591 = vmatprep.subr.bf16.mxu0 %v1106
    %1592 = vmatpush1.bf16.msra.mxu0 %v1105
    %1593 = vmatprep.subr.bf16.mxu0 %v1110
    %1594 = vmatpush1.bf16.msra.mxu0 %v1109
    %1595 = vmatprep.subr.bf16.mxu0 %v1114
    %1596 = vmatpush1.bf16.msra.mxu0 %v1113
    %1597 = vmatprep.mubr.bf16.mxu0 %v325
    %1598 = vmatmul.mubr.bf16.gmra.mrb[0].mxu0 %v311
    %v1599 = vpop.f32.mrb[0].mxu0
    %v1600 = vadd.f32 %v1559, %v1599
    %v1601 = vpop.f32.mrb[0].mxu0
    %v1602 = vadd.f32 %v1561, %v1601
    %v1603 = vpop.f32.mrb[0].mxu0
    %v1604 = vpop.f32.mrb[0].mxu0
    %1605 = vdwg.mxu0
    %1606 = vmatprep.subr.bf16.mxu0 %v1118
    %1607 = vmatpush1.bf16.msra.mxu0 %v1117
    %1608 = vmatprep.subr.bf16.mxu0 0
    %1609 = vmatpush1.bf16.msra.mxu0 0
    %1610 = vmatprep.subr.bf16.mxu0 0
    %1611 = vmatpush1.bf16.msra.mxu0 0
    %1612 = vmatprep.subr.bf16.mxu0 0
    %1613 = vmatpush1.bf16.msra.mxu0 0
    %1614 = vmatprep.subr.bf16.mxu0 0
    %1615 = vmatpush1.bf16.msra.mxu0 0
    %1616 = vmatprep.subr.bf16.mxu0 0
    %1617 = vmatpush1.bf16.msra.mxu0 0
    %1618 = vmatprep.subr.bf16.mxu0 0
    %1619 = vmatpush1.bf16.msra.mxu0 0
    %1620 = vmatprep.subr.bf16.mxu0 0
    %1621 = vmatpush1.bf16.msra.mxu0 0
    %1622 = vmatprep.subr.bf16.mxu0 0
    %1623 = vmatpush1.bf16.msra.mxu0 0
    %1624 = vmatprep.subr.bf16.mxu0 0
    %1625 = vmatpush1.bf16.msra.mxu0 0
    %1626 = vmatprep.subr.bf16.mxu0 0
    %1627 = vmatpush1.bf16.msra.mxu0 0
    %1628 = vmatprep.subr.bf16.mxu0 0
    %1629 = vmatpush1.bf16.msra.mxu0 0
    %1630 = vmatprep.subr.bf16.mxu0 0
    %1631 = vmatpush1.bf16.msra.mxu0 0
    %1632 = vmatprep.subr.bf16.mxu0 0
    %1633 = vmatpush1.bf16.msra.mxu0 0
    %1634 = vmatprep.subr.bf16.mxu0 0
    %1635 = vmatpush1.bf16.msra.mxu0 0
    %1636 = vmatprep.subr.bf16.mxu0 0
    %1637 = vmatpush1.bf16.msra.mxu0 0
    %1638 = vmatprep.mubr.bf16.mxu0 0
    %1639 = vmatmul.mubr.bf16.gmra.mrb[0].mxu0 %v1317
    %v1640 = vpop.f32.mrb[0].mxu0
    %v1641 = vadd.f32 %v1600, %v1640
    %v1642 = vpop.f32.mrb[0].mxu0
    %v1643 = vadd.f32 %v1602, %v1642
    %v1644 = vpop.f32.mrb[0].mxu0
    %v1645 = vpop.f32.mrb[0].mxu0
    %1646 = vdwg.mxu0
    %v1647 = vmax.f32 %v1477, 0.0
    %v1648 = vmax.f32 %v1479, 0.0
    %v1649 = vmax.f32 %v1641, 0.0
    %v1650 = vmax.f32 %v1643, 0.0
    %v1651 = vpack.c.bf16 %v1647, %v1647
    %v1652 = vpack.c.bf16 %v1648, %v1648
    %v1653 = vpack.c.bf16 %v1649, %v1649
    %v1654 = vpack.c.bf16 %v1650, %v1650
    %v1655 = vld [vmem:[#allocation7] sm:$0xf]
    %v1656 = vld [vmem:[#allocation7 + $0x4] sm:$0xf]
    %v1657 = vld [vmem:[#allocation7 + $0x8] sm:$0xf]
    %v1658 = vld [vmem:[#allocation7 + $0xc] sm:$0xf]
    %v1659 = vld [vmem:[#allocation7 + $0x10] sm:$0xf]
    %v1660 = vld [vmem:[#allocation7 + $0x14] sm:$0xf]
    %v1661 = vld [vmem:[#allocation7 + $0x18] sm:$0xf]
    %v1662 = vld [vmem:[#allocation7 + $0x1c] sm:$0xf]
    %v1663 = vld [vmem:[#allocation7 + $0x20] sm:$0xf]
    %v1664 = vld [vmem:[#allocation7 + $0x24] sm:$0xf]
    %v1665 = vld [vmem:[#allocation7 + $0x28] sm:$0xf]
    %v1666 = vld [vmem:[#allocation7 + $0x2c] sm:$0xf]
    %v1667 = vld [vmem:[#allocation7 + $0x30] sm:$0xf]
    %v1668 = vld [vmem:[#allocation7 + $0x34] sm:$0xf]
    %v1669 = vld [vmem:[#allocation7 + $0x38] sm:$0xf]
    %v1670 = vld [vmem:[#allocation7 + $0x3c] sm:$0xf]
    %v1671 = vld [vmem:[#allocation7 + $0x40] sm:$0xf]
    %v1672 = vld [vmem:[#allocation7 + $0x44] sm:$0xf]
    %v1673 = vld [vmem:[#allocation7 + $0x48] sm:$0xf]
    %v1674 = vld [vmem:[#allocation7 + $0x4c] sm:$0xf]
    %v1675 = vld [vmem:[#allocation7 + $0x50] sm:$0xf]
    %v1676 = vld [vmem:[#allocation7 + $0x54] sm:$0xf]
    %v1677 = vld [vmem:[#allocation7 + $0x58] sm:$0xf]
    %v1678 = vld [vmem:[#allocation7 + $0x5c] sm:$0xf]
    %v1679 = vld [vmem:[#allocation7 + $0x60] sm:$0xf]
    %v1680 = vld [vmem:[#allocation7 + $0x64] sm:$0xf]
    %v1681 = vld [vmem:[#allocation7 + $0x68] sm:$0xf]
    %v1682 = vld [vmem:[#allocation7 + $0x6c] sm:$0xf]
    %v1683 = vld [vmem:[#allocation7 + $0x70] sm:$0xf]
    %v1684 = vld [vmem:[#allocation7 + $0x74] sm:$0xf]
    %v1685 = vld [vmem:[#allocation7 + $0x78] sm:$0xf]
    %v1686 = vld [vmem:[#allocation7 + $0x7c] sm:$0xf]
    %v1687 = vld [vmem:[#allocation7 + $0x80] sm:$0xf]
    %v1688 = vld [vmem:[#allocation7 + $0x84] sm:$0xf]
    %v1689 = vld [vmem:[#allocation7 + $0x88] sm:$0xf]
    %v1690 = vld [vmem:[#allocation7 + $0x8c] sm:$0xf]
    %v1691 = vld [vmem:[#allocation7 + $0x90] sm:$0xf]
    %v1692 = vld [vmem:[#allocation7 + $0x94] sm:$0xf]
    %v1693 = vld [vmem:[#allocation7 + $0x98] sm:$0xf]
    %v1694 = vld [vmem:[#allocation7 + $0x9c] sm:$0xf]
    %v1695 = vld [vmem:[#allocation7 + $0xa0] sm:$0xf]
    %v1696 = vld [vmem:[#allocation7 + $0xa4] sm:$0xf]
    %v1697 = vld [vmem:[#allocation7 + $0xa8] sm:$0xf]
    %v1698 = vld [vmem:[#allocation7 + $0xac] sm:$0xf]
    %v1699 = vld [vmem:[#allocation7 + $0xb0] sm:$0xf]
    %v1700 = vld [vmem:[#allocation7 + $0xb4] sm:$0xf]
    %v1701 = vld [vmem:[#allocation7 + $0xb8] sm:$0xf]
    %v1702 = vld [vmem:[#allocation7 + $0xbc] sm:$0xf]
    %v1703 = vld [vmem:[#allocation7 + $0xc0] sm:$0xf]
    %v1704 = vld [vmem:[#allocation7 + $0xc4] sm:$0xf]
    %v1705 = vld [vmem:[#allocation7 + $0xc8] sm:$0xf]
    %v1706 = vld [vmem:[#allocation7 + $0xcc] sm:$0xf]
    %v1707 = vld [vmem:[#allocation7 + $0xd0] sm:$0xf]
    %v1708 = vld [vmem:[#allocation7 + $0xd4] sm:$0xf]
    %v1709 = vld [vmem:[#allocation7 + $0xd8] sm:$0xf]
    %v1710 = vld [vmem:[#allocation7 + $0xdc] sm:$0xf]
    %v1711 = vld [vmem:[#allocation7 + $0xe0] sm:$0xf]
    %v1712 = vld [vmem:[#allocation7 + $0xe4] sm:$0xf]
    %v1713 = vld [vmem:[#allocation7 + $0xe8] sm:$0xf]
    %v1714 = vld [vmem:[#allocation7 + $0xec] sm:$0xf]
    %v1715 = vld [vmem:[#allocation7 + $0xf0] sm:$0xf]
    %v1716 = vld [vmem:[#allocation7 + $0xf4] sm:$0xf]
    %v1717 = vld [vmem:[#allocation7 + $0xf8] sm:$0xf]
    %v1718 = vld [vmem:[#allocation7 + $0xfc] sm:$0xf]
    %v1719 = vld [vmem:[%s4] sm:$0x1]
    %v1721 = vlaneseq
    %v1722 = vshrl.u32 %v1721, 7
    %v1723 = vsub.s32 0, %v1722
    %v1724 = vrot.slane %v1719, %v1723
    %v1790 = vunpack.c.l.b16 %v1655
    %v1791 = vunpack.c.l.b16 %v1656
    %v1792 = vunpack.c.l.b16 %v1657
    %v1793 = vunpack.c.l.b16 %v1658
    %v1794 = vunpack.c.l.b16 %v1659
    %v1795 = vunpack.c.l.b16 %v1660
    %v1796 = vunpack.c.l.b16 %v1661
    %v1797 = vunpack.c.l.b16 %v1662
    %v1798 = vunpack.c.l.b16 %v1663
    %v1799 = vunpack.c.l.b16 %v1664
    %v1800 = vunpack.c.l.b16 %v1665
    %v1801 = vunpack.c.l.b16 %v1666
    %v1802 = vunpack.c.l.b16 %v1667
    %v1803 = vunpack.c.l.b16 %v1668
    %v1804 = vunpack.c.l.b16 %v1669
    %v1805 = vunpack.c.l.b16 %v1670
    %v1806 = vunpack.c.l.b16 %v1671
    %v1807 = vunpack.c.l.b16 %v1672
    %v1808 = vunpack.c.l.b16 %v1673
    %v1809 = vunpack.c.l.b16 %v1674
    %v1810 = vunpack.c.l.b16 %v1675
    %v1811 = vunpack.c.l.b16 %v1676
    %v1812 = vunpack.c.l.b16 %v1677
    %v1813 = vunpack.c.l.b16 %v1678
    %v1814 = vunpack.c.l.b16 %v1679
    %v1815 = vunpack.c.l.b16 %v1680
    %v1816 = vunpack.c.l.b16 %v1681
    %v1817 = vunpack.c.l.b16 %v1682
    %v1818 = vunpack.c.l.b16 %v1683
    %v1819 = vunpack.c.l.b16 %v1684
    %v1820 = vunpack.c.l.b16 %v1685
    %v1821 = vunpack.c.l.b16 %v1686
    %v1822 = vunpack.c.l.b16 %v1687
    %v1823 = vunpack.c.l.b16 %v1688
    %v1824 = vunpack.c.l.b16 %v1689
    %v1825 = vunpack.c.l.b16 %v1690
    %v1826 = vunpack.c.l.b16 %v1691
    %v1827 = vunpack.c.l.b16 %v1692
    %v1828 = vunpack.c.l.b16 %v1693
    %v1829 = vunpack.c.l.b16 %v1694
    %v1830 = vunpack.c.l.b16 %v1695
    %v1831 = vunpack.c.l.b16 %v1696
    %v1832 = vunpack.c.l.b16 %v1697
    %v1833 = vunpack.c.l.b16 %v1698
    %v1834 = vunpack.c.l.b16 %v1699
    %v1835 = vunpack.c.l.b16 %v1700
    %v1836 = vunpack.c.l.b16 %v1701
    %v1837 = vunpack.c.l.b16 %v1702
    %v1838 = vunpack.c.l.b16 %v1703
    %v1839 = vunpack.c.l.b16 %v1704
    %v1840 = vunpack.c.l.b16 %v1705
    %v1841 = vunpack.c.l.b16 %v1706
    %v1842 = vunpack.c.l.b16 %v1707
    %v1843 = vunpack.c.l.b16 %v1708
    %v1844 = vunpack.c.l.b16 %v1709
    %v1845 = vunpack.c.l.b16 %v1710
    %v1846 = vunpack.c.l.b16 %v1711
    %v1847 = vunpack.c.l.b16 %v1712
    %v1848 = vunpack.c.l.b16 %v1713
    %v1849 = vunpack.c.l.b16 %v1714
    %v1850 = vunpack.c.l.b16 %v1715
    %v1851 = vunpack.c.l.b16 %v1716
    %v1852 = vunpack.c.l.b16 %v1717
    %v1853 = vunpack.c.l.b16 %v1718
    %v1854 = vpack.c.b16 %v1791, %v1790
    %v1855 = vpack.c.b16 %v1793, %v1792
    %v1856 = vpack.c.b16 %v1795, %v1794
    %v1857 = vpack.c.b16 %v1797, %v1796
    %v1858 = vpack.c.b16 %v1799, %v1798
    %v1859 = vpack.c.b16 %v1801, %v1800
    %v1860 = vpack.c.b16 %v1803, %v1802
    %v1861 = vpack.c.b16 %v1805, %v1804
    %v1862 = vpack.c.b16 %v1807, %v1806
    %v1863 = vpack.c.b16 %v1809, %v1808
    %v1864 = vpack.c.b16 %v1811, %v1810
    %v1865 = vpack.c.b16 %v1813, %v1812
    %v1866 = vpack.c.b16 %v1815, %v1814
    %v1867 = vpack.c.b16 %v1817, %v1816
    %v1868 = vpack.c.b16 %v1819, %v1818
    %v1869 = vpack.c.b16 %v1821, %v1820
    %v1870 = vpack.c.b16 %v1823, %v1822
    %v1871 = vpack.c.b16 %v1825, %v1824
    %v1872 = vpack.c.b16 %v1827, %v1826
    %v1873 = vpack.c.b16 %v1829, %v1828
    %v1874 = vpack.c.b16 %v1831, %v1830
    %v1875 = vpack.c.b16 %v1833, %v1832
    %v1876 = vpack.c.b16 %v1835, %v1834
    %v1877 = vpack.c.b16 %v1837, %v1836
    %v1878 = vpack.c.b16 %v1839, %v1838
    %v1879 = vpack.c.b16 %v1841, %v1840
    %v1880 = vpack.c.b16 %v1843, %v1842
    %v1881 = vpack.c.b16 %v1845, %v1844
    %v1882 = vpack.c.b16 %v1847, %v1846
    %v1883 = vpack.c.b16 %v1849, %v1848
    %v1884 = vpack.c.b16 %v1851, %v1850
    %v1885 = vpack.c.b16 %v1853, %v1852
    %1918 = vmatprep.subr.bf16.mxu0 0
    %1919 = vmatpush1.bf16.msra.mxu0 %v1854
    %1920 = vmatprep.subr.bf16.mxu0 0
    %1921 = vmatpush1.bf16.msra.mxu0 %v1855
    %1922 = vmatprep.subr.bf16.mxu0 0
    %1923 = vmatpush1.bf16.msra.mxu0 %v1856
    %1924 = vmatprep.subr.bf16.mxu0 0
    %1925 = vmatpush1.bf16.msra.mxu0 %v1857
    %1926 = vmatprep.subr.bf16.mxu0 0
    %1927 = vmatpush1.bf16.msra.mxu0 %v1858
    %1928 = vmatprep.subr.bf16.mxu0 0
    %1929 = vmatpush1.bf16.msra.mxu0 %v1859
    %1930 = vmatprep.subr.bf16.mxu0 0
    %1931 = vmatpush1.bf16.msra.mxu0 %v1860
    %1932 = vmatprep.subr.bf16.mxu0 0
    %1933 = vmatpush1.bf16.msra.mxu0 %v1861
    %1934 = vmatprep.subr.bf16.mxu0 0
    %1935 = vmatpush1.bf16.msra.mxu0 %v1862
    %1936 = vmatprep.subr.bf16.mxu0 0
    %1937 = vmatpush1.bf16.msra.mxu0 %v1863
    %1938 = vmatprep.subr.bf16.mxu0 0
    %1939 = vmatpush1.bf16.msra.mxu0 %v1864
    %1940 = vmatprep.subr.bf16.mxu0 0
    %1941 = vmatpush1.bf16.msra.mxu0 %v1865
    %1942 = vmatprep.subr.bf16.mxu0 0
    %1943 = vmatpush1.bf16.msra.mxu0 %v1866
    %1944 = vmatprep.subr.bf16.mxu0 0
    %1945 = vmatpush1.bf16.msra.mxu0 %v1867
    %1946 = vmatprep.subr.bf16.mxu0 0
    %1947 = vmatpush1.bf16.msra.mxu0 %v1868
    %1948 = vmatprep.subr.bf16.mxu0 0
    %1949 = vmatpush1.bf16.msra.mxu0 %v1869
    %1950 = vmatprep.mubr.bf16.mxu0 %v1652
    %1951 = vmatmul.mubr.bf16.gmra.mrb[0].mxu0 %v1651
    %v1952 = vpop.f32.mrb[0].mxu0
    %v1953 = vadd.f32 %v1724, %v1952
    %v1954 = vpop.f32.mrb[0].mxu0
    %v1955 = vpop.f32.mrb[0].mxu0
    %v1956 = vpop.f32.mrb[0].mxu0
    %1957 = vdwg.mxu0
    %1958 = vmatprep.subr.bf16.mxu0 0
    %1959 = vmatpush1.bf16.msra.mxu0 %v1870
    %1960 = vmatprep.subr.bf16.mxu0 0
    %1961 = vmatpush1.bf16.msra.mxu0 %v1871
    %1962 = vmatprep.subr.bf16.mxu0 0
    %1963 = vmatpush1.bf16.msra.mxu0 %v1872
    %1964 = vmatprep.subr.bf16.mxu0 0
    %1965 = vmatpush1.bf16.msra.mxu0 %v1873
    %1966 = vmatprep.subr.bf16.mxu0 0
    %1967 = vmatpush1.bf16.msra.mxu0 %v1874
    %1968 = vmatprep.subr.bf16.mxu0 0
    %1969 = vmatpush1.bf16.msra.mxu0 %v1875
    %1970 = vmatprep.subr.bf16.mxu0 0
    %1971 = vmatpush1.bf16.msra.mxu0 %v1876
    %1972 = vmatprep.subr.bf16.mxu0 0
    %1973 = vmatpush1.bf16.msra.mxu0 %v1877
    %1974 = vmatprep.subr.bf16.mxu0 0
    %1975 = vmatpush1.bf16.msra.mxu0 %v1878
    %1976 = vmatprep.subr.bf16.mxu0 0
    %1977 = vmatpush1.bf16.msra.mxu0 %v1879
    %1978 = vmatprep.subr.bf16.mxu0 0
    %1979 = vmatpush1.bf16.msra.mxu0 %v1880
    %1980 = vmatprep.subr.bf16.mxu0 0
    %1981 = vmatpush1.bf16.msra.mxu0 %v1881
    %1982 = vmatprep.subr.bf16.mxu0 0
    %1983 = vmatpush1.bf16.msra.mxu0 %v1882
    %1984 = vmatprep.subr.bf16.mxu0 0
    %1985 = vmatpush1.bf16.msra.mxu0 %v1883
    %1986 = vmatprep.subr.bf16.mxu0 0
    %1987 = vmatpush1.bf16.msra.mxu0 %v1884
    %1988 = vmatprep.subr.bf16.mxu0 0
    %1989 = vmatpush1.bf16.msra.mxu0 %v1885
    %1990 = vmatprep.mubr.bf16.mxu0 %v1654
    %1991 = vmatmul.mubr.bf16.gmra.mrb[0].mxu0 %v1653
    %v1992 = vpop.f32.mrb[0].mxu0
    %v1993 = vadd.f32 %v1953, %v1992
    %v1994 = vpop.f32.mrb[0].mxu0
    %v1995 = vpop.f32.mrb[0].mxu0
    %v1996 = vpop.f32.mrb[0].mxu0
    %1997 = vdwg.mxu0
    %1998 = vst [vmem:[#allocation8] sm:$0x3] %v1993
    // Predicated region
    $region34: #{tpu_custom_call.1} parent=1 // pred_check
      _
    $region35: #{tpu_custom_call.1} parent=1 // pred_check_branch
      %2000 = sbr.rel (0) target = $region37
    $region36: #{tpu_custom_call.1} parent=1 // pred_region
      %s2002 = ssub.s32 32, 32
      %2003 = vsyncadd [#allocation4], %s2002
      %s2005 = sshll.u32 [#allocation8], 4
      %s2006 = int_to_ptr.vmem [resolvable:$true] %s2005
      %2008 = dma.vmem_to_hbm [thread:$0]  %s2006, 32, %s5, [#allocation4]
    $region37: #{tpu_custom_call.1} parent=1 // pred_fallthru
      _
    // Predicated region
    $region38: #{tpu_custom_call.1} parent=1 // pred_check
      _
    $region39: #{tpu_custom_call.1} parent=1 // pred_check_branch
      %2010 = sbr.rel (0) target = $region41
    $region40: #{tpu_custom_call.1} parent=1 // pred_region
      %2011 = dma.done [#allocation4], 32
    $region41: #{tpu_custom_call.1} parent=1 // pred_fallthru
      _
    %2012 = vsyncpa [#allocation3], 1
    %2013 = vsyncpa [#allocation6], 1
    %2014 = vsyncpa [#allocation4], 1

</llo_original>
